<compile_context>
chip_gen: v6e
topology: v6e:2x2x1
jax: 0.10.0
libtpu: 0.0.40
codegen_flags: <defaults>
</compile_context>

<pallas_src>
import functools
import math

import jax
import jax.numpy as jnp
from jax.experimental import pallas as pl
from jax.experimental.pallas import tpu as pltpu


def _attention_block_kernel(
    q_ref, v_ref,
    wqt_ref, bq_ref, wkt_ref, bk_ref, wvt_ref, bv_ref,
    wot_ref, bo_ref,
    g1_ref, be1_ref, g2_ref, be2_ref,
    out_ref,
    *, nhead, eps,
):
    N, L, E = q_ref.shape
    _, S, Dv = v_ref.shape
    hd = E // nhead
    mdt = wqt_ref.dtype            # MXU input dtype (bf16 by default), f32 accumulation

    x = q_ref[...].reshape(N * L, E)     # (N*L, E) f32, batch-major rows (free reshape)
    v = v_ref[...].reshape(N * S, Dv)    # (N*S, Dv)

    # ---- in-projections: one whole-batch MXU matmul each --------------------------
    # Weights arrive pre-transposed; 1/sqrt(hd) is already folded into wqt / bq.
    Q = jnp.dot(x.astype(mdt), wqt_ref[...], preferred_element_type=jnp.float32) + bq_ref[...]
    K = jnp.dot(v.astype(mdt), wkt_ref[...], preferred_element_type=jnp.float32) + bk_ref[...]
    V = jnp.dot(v.astype(mdt), wvt_ref[...], preferred_element_type=jnp.float32) + bv_ref[...]

    Qb = Q.reshape(N, L, E)              # free: L == sublane tile of the (N*L, E) value
    Kb = K.reshape(N, S, E)
    Vb = V.reshape(N, S, E)

    # ---- per-head scaled-dot-product attention, batch folded into the einsum ------
    # TODO(synk): key_padding_mask / attn_mask are not supported (reference path passes None).
    ctx_heads = []
    for h in range(nhead):                       # static, small (nhead=4)
        cols = slice(h * hd, (h + 1) * hd)
        qh = Qb[:, :, cols].astype(mdt)          # (N, L, hd)
        kh = Kb[:, :, cols].astype(mdt)          # (N, S, hd)
        vh = Vb[:, :, cols].astype(mdt)          # (N, S, hd)
        s = jnp.einsum('nld,nsd->nls', qh, kh, preferred_element_type=jnp.float32)
        s = s - jnp.max(s, axis=-1, keepdims=True)
        p = jnp.exp(s)
        p = p * pl.reciprocal(jnp.sum(p, axis=-1, keepdims=True), approx=True)   # EUP
        ctx_heads.append(
            jnp.einsum('nls,nsd->nld', p.astype(mdt), vh,
                       preferred_element_type=jnp.float32))
    ctx = jnp.concatenate(ctx_heads, axis=-1).reshape(N * L, E)    # (N*L, E) f32

    attn = jnp.dot(ctx.astype(mdt), wot_ref[...],
                   preferred_element_type=jnp.float32) + bo_ref[...]

    # ---- residual + LayerNorm1 (f32 elementwise; v5e-safe) -------------------------
    x1 = x + attn
    mu1 = jnp.mean(x1, axis=-1, keepdims=True)
    var1 = jnp.mean(jnp.square(x1 - mu1), axis=-1, keepdims=True)
    x1 = (x1 - mu1) * jax.lax.rsqrt(var1 + eps) * g1_ref[...] + be1_ref[...]

    # NOTE: the reference computes linear2(relu(linear1(x1))) here but then adds x1
    # (not the FFN output) into the second residual, so the FFN never influences the
    # module's output -> removed entirely (no dead matmuls, no dead writeback).

    # ---- residual (q + dropout2(q) == 2q at inference) + LayerNorm2 ----------------
    y = x1 + x1
    mu2 = jnp.mean(y, axis=-1, keepdims=True)
    var2 = jnp.mean(jnp.square(y - mu2), axis=-1, keepdims=True)
    out_ref[...] = ((y - mu2) * jax.lax.rsqrt(var2 + eps) * g2_ref[...]
                    + be2_ref[...]).reshape(N, L, E)


@functools.partial(jax.jit, static_argnames=("nhead", "eps", "matmul_dtype"))
def attention_forward(q_lne, v_sne, params, nhead, eps=1e-5, matmul_dtype=jnp.bfloat16):
    """q_lne: (L, N, d_model) seq-first, v_sne: (S, N, d_value) -> (L, N, d_model)."""
    L, N, E = q_lne.shape
    S, _, Dv = v_sne.shape
    scale = 1.0 / math.sqrt(E // nhead)
    f32 = jnp.float32

    # Batch-major activations for the kernel (tiny ~2 KB copies; see header comment).
    qb = jnp.transpose(q_lne, (1, 0, 2)).astype(f32)      # (N, L, E)
    vb = jnp.transpose(v_sne, (1, 0, 2)).astype(f32)      # (N, S, Dv)

    # One-time weight prep: transpose, fold the attention scale, cast matmul weights
    # to the MXU dtype. Biases / LayerNorm params stay f32 (added to f32 accumulators).
    weights = (
        (params['wq'].T * scale).astype(matmul_dtype),    # (E, E)
        (params['bq'] * scale).astype(f32),               # (1, E)
        params['wk'].T.astype(matmul_dtype),              # (Dv, E)
        params['bk'].astype(f32),
        params['wv'].T.astype(matmul_dtype),              # (Dv, E)
        params['bv'].astype(f32),
        params['wo'].T.astype(matmul_dtype),              # (E, E)
        params['bo'].astype(f32),
        params['g1'].astype(f32), params['be1'].astype(f32),
        params['g2'].astype(f32), params['be2'].astype(f32),
    )

    kernel = functools.partial(_attention_block_kernel, nhead=nhead, eps=eps)

    out = pl.pallas_call(
        kernel,
        out_shape=jax.ShapeDtypeStruct((N, L, E), f32),
        # Single invocation (no grid): every operand is a whole-array VMEM block.
        in_specs=[pl.BlockSpec(memory_space=pltpu.MemorySpace.VMEM)] * (2 + len(weights)),
        out_specs=pl.BlockSpec(memory_space=pltpu.MemorySpace.VMEM),
    )(qb, vb, *weights)

    return jnp.transpose(out, (1, 0, 2))                  # back to seq-first (L, N, E)


def _reference_forward(q_lne, v_sne, params, nhead, eps=1e-5):
    """Pure-JAX f32 reference of the PyTorch module's forward (eval mode)."""
    L, N, E = q_lne.shape
    S = v_sne.shape[0]
    hd = E // nhead
    scale = 1.0 / math.sqrt(hd)
    q = jnp.transpose(q_lne, (1, 0, 2))                   # (N, L, E)
    v = jnp.transpose(v_sne, (1, 0, 2))                   # (N, S, Dv)
    Q = (jnp.einsum('nle,fe->nlf', q, params['wq']) + params['bq']) * scale
    K = jnp.einsum('nsd,fd->nsf', v, params['wk']) + params['bk']
    V = jnp.einsum('nsd,fd->nsf', v, params['wv']) + params['bv']
    Qh = Q.reshape(N, L, nhead, hd).transpose(0, 2, 1, 3)
    Kh = K.reshape(N, S, nhead, hd).transpose(0, 2, 1, 3)
    Vh = V.reshape(N, S, nhead, hd).transpose(0, 2, 1, 3)
    p = jax.nn.softmax(jnp.einsum('nhld,nhsd->nhls', Qh, Kh), axis=-1)
    ctx = jnp.einsum('nhls,nhsd->nhld', p, Vh).transpose(0, 2, 1, 3).reshape(N, L, E)
    attn = jnp.einsum('nle,fe->nlf', ctx, params['wo']) + params['bo']

    def ln(x, g, b):
        mu = jnp.mean(x, axis=-1, keepdims=True)
        var = jnp.mean(jnp.square(x - mu), axis=-1, keepdims=True)
        return (x - mu) * jax.lax.rsqrt(var + eps) * g + b

    x = ln(q + attn, params['g1'], params['be1'])
    y = ln(x + x, params['g2'], params['be2'])             # reference adds q, NOT the FFN
    return jnp.transpose(y, (1, 0, 2))


if __name__ == "__main__":
    d_model, d_value, d_hidden, nhead = 32, 16, 64, 4      # d_hidden only feeds the dead FFN
    L, S, N = 8, 8, 2

    key = jax.random.PRNGKey(0)
    keys = jax.random.split(key, 16)

    def nrm(k, shape, scl=0.1):
        return scl * jax.random.normal(k, shape, jnp.float32)

    # Parameters matching nn.MultiheadAttention(embed_dim=d_model, kdim=vdim=d_value)
    # plus the two LayerNorms. linear1/linear2 exist on the module but never affect its
    # output (the second residual adds q, not the FFN result), so they are omitted.
    params = dict(
        wq=nrm(keys[0], (d_model, d_model)),
        bq=nrm(keys[1], (1, d_model)),
        wk=nrm(keys[2], (d_model, d_value)),
        bk=nrm(keys[3], (1, d_model)),
        wv=nrm(keys[4], (d_model, d_value)),
        bv=nrm(keys[5], (1, d_model)),
        wo=nrm(keys[6], (d_model, d_model)),
        bo=nrm(keys[7], (1, d_model)),
        g1=jnp.ones((1, d_model), jnp.float32),
        be1=jnp.zeros((1, d_model), jnp.float32),
        g2=jnp.ones((1, d_model), jnp.float32),
        be2=jnp.zeros((1, d_model), jnp.float32),
    )

    q = jax.random.normal(keys[12], (L, N, d_model), jnp.float32)   # (L, N, E) seq-first
    v = jax.random.normal(keys[13], (S, N, d_value), jnp.float32)   # (S, N, Dv) seq-first

    out = attention_forward(q, v, params, nhead=nhead)
    out = jax.block_until_ready(out)
    assert out.shape == (L, N, d_model)

    ref = _reference_forward(q, v, params, nhead)
    max_err = float(jnp.max(jnp.abs(out - ref)))
    assert max_err < 5e-2, f"kernel deviates from reference: max abs err = {max_err}"
    print("KERNEL_OK")
</pallas_src>

<mosaic_0001>
module attributes {stable_mosaic.version = 11 : i64} {
  func.func @_attention_block_kernel(%arg0: memref<2x8x32xf32, #tpu.memory_space<vmem>>, %arg1: memref<2x8x16xf32, #tpu.memory_space<vmem>>, %arg2: memref<32x32xbf16, #tpu.memory_space<vmem>>, %arg3: memref<1x32xf32, #tpu.memory_space<vmem>>, %arg4: memref<16x32xbf16, #tpu.memory_space<vmem>>, %arg5: memref<1x32xf32, #tpu.memory_space<vmem>>, %arg6: memref<16x32xbf16, #tpu.memory_space<vmem>>, %arg7: memref<1x32xf32, #tpu.memory_space<vmem>>, %arg8: memref<32x32xbf16, #tpu.memory_space<vmem>>, %arg9: memref<1x32xf32, #tpu.memory_space<vmem>>, %arg10: memref<1x32xf32, #tpu.memory_space<vmem>>, %arg11: memref<1x32xf32, #tpu.memory_space<vmem>>, %arg12: memref<1x32xf32, #tpu.memory_space<vmem>>, %arg13: memref<1x32xf32, #tpu.memory_space<vmem>>, %arg14: memref<2x8x32xf32, #tpu.memory_space<vmem>>) attributes {dimension_semantics = [], scalar_prefetch = 0 : i64, scratch_operands = 0 : i64, tpu.core_type = #tpu.core_type<tc>} {
    %c0 = arith.constant 0 : index
    %c0_0 = arith.constant 0 : index
    %c0_1 = arith.constant 0 : index
    %0 = vector.load %arg0[%c0, %c0_0, %c0_1] : memref<2x8x32xf32, #tpu.memory_space<vmem>>, vector<2x8x32xf32>
    %1 = vector.shape_cast %0 : vector<2x8x32xf32> to vector<16x32xf32>
    %c0_2 = arith.constant 0 : index
    %c0_3 = arith.constant 0 : index
    %c0_4 = arith.constant 0 : index
    %2 = vector.load %arg1[%c0_2, %c0_3, %c0_4] : memref<2x8x16xf32, #tpu.memory_space<vmem>>, vector<2x8x16xf32>
    %3 = vector.shape_cast %2 : vector<2x8x16xf32> to vector<16x16xf32>
    %4 = arith.truncf %1 : vector<16x32xf32> to vector<16x32xbf16>
    %c0_5 = arith.constant 0 : index
    %c0_6 = arith.constant 0 : index
    %5 = vector.load %arg2[%c0_5, %c0_6] : memref<32x32xbf16, #tpu.memory_space<vmem>>, vector<32x32xbf16>
    %cst = arith.constant dense<0.000000e+00> : vector<16x32xf32>
    %6 = tpu.matmul %4, %5, %cst {dimension_numbers = #tpu.dot_dimension_numbers<[1], [0], [0], [1], [0, 0, 1, 1], [], []>} : vector<16x32xbf16>, vector<32x32xbf16>, vector<16x32xf32> -> vector<16x32xf32>
    %c0_7 = arith.constant 0 : index
    %c0_8 = arith.constant 0 : index
    %7 = vector.load %arg3[%c0_7, %c0_8] : memref<1x32xf32, #tpu.memory_space<vmem>>, vector<1x32xf32>
    %8 = vector.broadcast %7 : vector<1x32xf32> to vector<16x32xf32>
    %9 = arith.addf %6, %8 : vector<16x32xf32>
    %10 = arith.truncf %3 : vector<16x16xf32> to vector<16x16xbf16>
    %c0_9 = arith.constant 0 : index
    %c0_10 = arith.constant 0 : index
    %11 = vector.load %arg4[%c0_9, %c0_10] : memref<16x32xbf16, #tpu.memory_space<vmem>>, vector<16x32xbf16>
    %cst_11 = arith.constant dense<0.000000e+00> : vector<16x32xf32>
    %12 = tpu.matmul %10, %11, %cst_11 {dimension_numbers = #tpu.dot_dimension_numbers<[1], [0], [0], [1], [0, 0, 1, 1], [], []>} : vector<16x16xbf16>, vector<16x32xbf16>, vector<16x32xf32> -> vector<16x32xf32>
    %c0_12 = arith.constant 0 : index
    %c0_13 = arith.constant 0 : index
    %13 = vector.load %arg5[%c0_12, %c0_13] : memref<1x32xf32, #tpu.memory_space<vmem>>, vector<1x32xf32>
    %14 = vector.broadcast %13 : vector<1x32xf32> to vector<16x32xf32>
    %15 = arith.addf %12, %14 : vector<16x32xf32>
    %16 = arith.truncf %3 : vector<16x16xf32> to vector<16x16xbf16>
    %c0_14 = arith.constant 0 : index
    %c0_15 = arith.constant 0 : index
    %17 = vector.load %arg6[%c0_14, %c0_15] : memref<16x32xbf16, #tpu.memory_space<vmem>>, vector<16x32xbf16>
    %cst_16 = arith.constant dense<0.000000e+00> : vector<16x32xf32>
    %18 = tpu.matmul %16, %17, %cst_16 {dimension_numbers = #tpu.dot_dimension_numbers<[1], [0], [0], [1], [0, 0, 1, 1], [], []>} : vector<16x16xbf16>, vector<16x32xbf16>, vector<16x32xf32> -> vector<16x32xf32>
    %c0_17 = arith.constant 0 : index
    %c0_18 = arith.constant 0 : index
    %19 = vector.load %arg7[%c0_17, %c0_18] : memref<1x32xf32, #tpu.memory_space<vmem>>, vector<1x32xf32>
    %20 = vector.broadcast %19 : vector<1x32xf32> to vector<16x32xf32>
    %21 = arith.addf %18, %20 : vector<16x32xf32>
    %22 = vector.shape_cast %9 : vector<16x32xf32> to vector<2x8x32xf32>
    %23 = vector.shape_cast %15 : vector<16x32xf32> to vector<2x8x32xf32>
    %24 = vector.shape_cast %21 : vector<16x32xf32> to vector<2x8x32xf32>
    %25 = vector.extract_strided_slice %22 {offsets = [0, 0, 0], sizes = [2, 8, 8], strides = [1, 1, 1]} : vector<2x8x32xf32> to vector<2x8x8xf32>
    %26 = arith.truncf %25 : vector<2x8x8xf32> to vector<2x8x8xbf16>
    %27 = vector.extract_strided_slice %23 {offsets = [0, 0, 0], sizes = [2, 8, 8], strides = [1, 1, 1]} : vector<2x8x32xf32> to vector<2x8x8xf32>
    %28 = arith.truncf %27 : vector<2x8x8xf32> to vector<2x8x8xbf16>
    %29 = vector.extract_strided_slice %24 {offsets = [0, 0, 0], sizes = [2, 8, 8], strides = [1, 1, 1]} : vector<2x8x32xf32> to vector<2x8x8xf32>
    %30 = arith.truncf %29 : vector<2x8x8xf32> to vector<2x8x8xbf16>
    "tpu.trace_start"() <{level = 10 : i32, message = "nld,nsd->nls"}> : () -> ()
    %cst_19 = arith.constant dense<0.000000e+00> : vector<2x8x8xf32>
    %31 = tpu.matmul %26, %28, %cst_19 {dimension_numbers = #tpu.dot_dimension_numbers<[2], [2], [1], [1], [0, 0, 0, 1, 1, 1], [0], [0]>} : vector<2x8x8xbf16>, vector<2x8x8xbf16>, vector<2x8x8xf32> -> vector<2x8x8xf32>
    "tpu.trace_stop"() : () -> ()
    %cst_20 = arith.constant dense<0xFF800000> : vector<2x8xf32>
    %32 = vector.multi_reduction <maximumf>, %31, %cst_20 [2] : vector<2x8x8xf32> to vector<2x8xf32>
    %33 = vector.shape_cast %32 : vector<2x8xf32> to vector<2x8x1xf32>
    %34 = vector.broadcast %33 : vector<2x8x1xf32> to vector<2x8x8xf32>
    %35 = arith.subf %31, %34 : vector<2x8x8xf32>
    %36 = math.exp %35 : vector<2x8x8xf32>
    %cst_21 = arith.constant dense<0.000000e+00> : vector<2x8xf32>
    %37 = vector.multi_reduction <add>, %36, %cst_21 [2] : vector<2x8x8xf32> to vector<2x8xf32>
    %38 = vector.shape_cast %37 : vector<2x8xf32> to vector<2x8x1xf32>
    %39 = tpu.reciprocal %38 {approx = true} : vector<2x8x1xf32> -> vector<2x8x1xf32>
    %40 = vector.broadcast %39 : vector<2x8x1xf32> to vector<2x8x8xf32>
    %41 = arith.mulf %36, %40 : vector<2x8x8xf32>
    %42 = arith.truncf %41 : vector<2x8x8xf32> to vector<2x8x8xbf16>
    "tpu.trace_start"() <{level = 10 : i32, message = "nls,nsd->nld"}> : () -> ()
    %cst_22 = arith.constant dense<0.000000e+00> : vector<2x8x8xf32>
    %43 = tpu.matmul %42, %30, %cst_22 {dimension_numbers = #tpu.dot_dimension_numbers<[2], [1], [1], [2], [0, 0, 0, 1, 1, 2], [0], [0]>} : vector<2x8x8xbf16>, vector<2x8x8xbf16>, vector<2x8x8xf32> -> vector<2x8x8xf32>
    "tpu.trace_stop"() : () -> ()
    %44 = vector.extract_strided_slice %22 {offsets = [0, 0, 8], sizes = [2, 8, 8], strides = [1, 1, 1]} : vector<2x8x32xf32> to vector<2x8x8xf32>
    %45 = arith.truncf %44 : vector<2x8x8xf32> to vector<2x8x8xbf16>
    %46 = vector.extract_strided_slice %23 {offsets = [0, 0, 8], sizes = [2, 8, 8], strides = [1, 1, 1]} : vector<2x8x32xf32> to vector<2x8x8xf32>
    %47 = arith.truncf %46 : vector<2x8x8xf32> to vector<2x8x8xbf16>
    %48 = vector.extract_strided_slice %24 {offsets = [0, 0, 8], sizes = [2, 8, 8], strides = [1, 1, 1]} : vector<2x8x32xf32> to vector<2x8x8xf32>
    %49 = arith.truncf %48 : vector<2x8x8xf32> to vector<2x8x8xbf16>
    "tpu.trace_start"() <{level = 10 : i32, message = "nld,nsd->nls"}> : () -> ()
    %cst_23 = arith.constant dense<0.000000e+00> : vector<2x8x8xf32>
    %50 = tpu.matmul %45, %47, %cst_23 {dimension_numbers = #tpu.dot_dimension_numbers<[2], [2], [1], [1], [0, 0, 0, 1, 1, 1], [0], [0]>} : vector<2x8x8xbf16>, vector<2x8x8xbf16>, vector<2x8x8xf32> -> vector<2x8x8xf32>
    "tpu.trace_stop"() : () -> ()
    %cst_24 = arith.constant dense<0xFF800000> : vector<2x8xf32>
    %51 = vector.multi_reduction <maximumf>, %50, %cst_24 [2] : vector<2x8x8xf32> to vector<2x8xf32>
    %52 = vector.shape_cast %51 : vector<2x8xf32> to vector<2x8x1xf32>
    %53 = vector.broadcast %52 : vector<2x8x1xf32> to vector<2x8x8xf32>
    %54 = arith.subf %50, %53 : vector<2x8x8xf32>
    %55 = math.exp %54 : vector<2x8x8xf32>
    %cst_25 = arith.constant dense<0.000000e+00> : vector<2x8xf32>
    %56 = vector.multi_reduction <add>, %55, %cst_25 [2] : vector<2x8x8xf32> to vector<2x8xf32>
    %57 = vector.shape_cast %56 : vector<2x8xf32> to vector<2x8x1xf32>
    %58 = tpu.reciprocal %57 {approx = true} : vector<2x8x1xf32> -> vector<2x8x1xf32>
    %59 = vector.broadcast %58 : vector<2x8x1xf32> to vector<2x8x8xf32>
    %60 = arith.mulf %55, %59 : vector<2x8x8xf32>
    %61 = arith.truncf %60 : vector<2x8x8xf32> to vector<2x8x8xbf16>
    "tpu.trace_start"() <{level = 10 : i32, message = "nls,nsd->nld"}> : () -> ()
    %cst_26 = arith.constant dense<0.000000e+00> : vector<2x8x8xf32>
    %62 = tpu.matmul %61, %49, %cst_26 {dimension_numbers = #tpu.dot_dimension_numbers<[2], [1], [1], [2], [0, 0, 0, 1, 1, 2], [0], [0]>} : vector<2x8x8xbf16>, vector<2x8x8xbf16>, vector<2x8x8xf32> -> vector<2x8x8xf32>
    "tpu.trace_stop"() : () -> ()
    %63 = vector.extract_strided_slice %22 {offsets = [0, 0, 16], sizes = [2, 8, 8], strides = [1, 1, 1]} : vector<2x8x32xf32> to vector<2x8x8xf32>
    %64 = arith.truncf %63 : vector<2x8x8xf32> to vector<2x8x8xbf16>
    %65 = vector.extract_strided_slice %23 {offsets = [0, 0, 16], sizes = [2, 8, 8], strides = [1, 1, 1]} : vector<2x8x32xf32> to vector<2x8x8xf32>
    %66 = arith.truncf %65 : vector<2x8x8xf32> to vector<2x8x8xbf16>
    %67 = vector.extract_strided_slice %24 {offsets = [0, 0, 16], sizes = [2, 8, 8], strides = [1, 1, 1]} : vector<2x8x32xf32> to vector<2x8x8xf32>
    %68 = arith.truncf %67 : vector<2x8x8xf32> to vector<2x8x8xbf16>
    "tpu.trace_start"() <{level = 10 : i32, message = "nld,nsd->nls"}> : () -> ()
    %cst_27 = arith.constant dense<0.000000e+00> : vector<2x8x8xf32>
    %69 = tpu.matmul %64, %66, %cst_27 {dimension_numbers = #tpu.dot_dimension_numbers<[2], [2], [1], [1], [0, 0, 0, 1, 1, 1], [0], [0]>} : vector<2x8x8xbf16>, vector<2x8x8xbf16>, vector<2x8x8xf32> -> vector<2x8x8xf32>
    "tpu.trace_stop"() : () -> ()
    %cst_28 = arith.constant dense<0xFF800000> : vector<2x8xf32>
    %70 = vector.multi_reduction <maximumf>, %69, %cst_28 [2] : vector<2x8x8xf32> to vector<2x8xf32>
    %71 = vector.shape_cast %70 : vector<2x8xf32> to vector<2x8x1xf32>
    %72 = vector.broadcast %71 : vector<2x8x1xf32> to vector<2x8x8xf32>
    %73 = arith.subf %69, %72 : vector<2x8x8xf32>
    %74 = math.exp %73 : vector<2x8x8xf32>
    %cst_29 = arith.constant dense<0.000000e+00> : vector<2x8xf32>
    %75 = vector.multi_reduction <add>, %74, %cst_29 [2] : vector<2x8x8xf32> to vector<2x8xf32>
    %76 = vector.shape_cast %75 : vector<2x8xf32> to vector<2x8x1xf32>
    %77 = tpu.reciprocal %76 {approx = true} : vector<2x8x1xf32> -> vector<2x8x1xf32>
    %78 = vector.broadcast %77 : vector<2x8x1xf32> to vector<2x8x8xf32>
    %79 = arith.mulf %74, %78 : vector<2x8x8xf32>
    %80 = arith.truncf %79 : vector<2x8x8xf32> to vector<2x8x8xbf16>
    "tpu.trace_start"() <{level = 10 : i32, message = "nls,nsd->nld"}> : () -> ()
    %cst_30 = arith.constant dense<0.000000e+00> : vector<2x8x8xf32>
    %81 = tpu.matmul %80, %68, %cst_30 {dimension_numbers = #tpu.dot_dimension_numbers<[2], [1], [1], [2], [0, 0, 0, 1, 1, 2], [0], [0]>} : vector<2x8x8xbf16>, vector<2x8x8xbf16>, vector<2x8x8xf32> -> vector<2x8x8xf32>
    "tpu.trace_stop"() : () -> ()
    %82 = vector.extract_strided_slice %22 {offsets = [0, 0, 24], sizes = [2, 8, 8], strides = [1, 1, 1]} : vector<2x8x32xf32> to vector<2x8x8xf32>
    %83 = arith.truncf %82 : vector<2x8x8xf32> to vector<2x8x8xbf16>
    %84 = vector.extract_strided_slice %23 {offsets = [0, 0, 24], sizes = [2, 8, 8], strides = [1, 1, 1]} : vector<2x8x32xf32> to vector<2x8x8xf32>
    %85 = arith.truncf %84 : vector<2x8x8xf32> to vector<2x8x8xbf16>
    %86 = vector.extract_strided_slice %24 {offsets = [0, 0, 24], sizes = [2, 8, 8], strides = [1, 1, 1]} : vector<2x8x32xf32> to vector<2x8x8xf32>
    %87 = arith.truncf %86 : vector<2x8x8xf32> to vector<2x8x8xbf16>
    "tpu.trace_start"() <{level = 10 : i32, message = "nld,nsd->nls"}> : () -> ()
    %cst_31 = arith.constant dense<0.000000e+00> : vector<2x8x8xf32>
    %88 = tpu.matmul %83, %85, %cst_31 {dimension_numbers = #tpu.dot_dimension_numbers<[2], [2], [1], [1], [0, 0, 0, 1, 1, 1], [0], [0]>} : vector<2x8x8xbf16>, vector<2x8x8xbf16>, vector<2x8x8xf32> -> vector<2x8x8xf32>
    "tpu.trace_stop"() : () -> ()
    %cst_32 = arith.constant dense<0xFF800000> : vector<2x8xf32>
    %89 = vector.multi_reduction <maximumf>, %88, %cst_32 [2] : vector<2x8x8xf32> to vector<2x8xf32>
    %90 = vector.shape_cast %89 : vector<2x8xf32> to vector<2x8x1xf32>
    %91 = vector.broadcast %90 : vector<2x8x1xf32> to vector<2x8x8xf32>
    %92 = arith.subf %88, %91 : vector<2x8x8xf32>
    %93 = math.exp %92 : vector<2x8x8xf32>
    %cst_33 = arith.constant dense<0.000000e+00> : vector<2x8xf32>
    %94 = vector.multi_reduction <add>, %93, %cst_33 [2] : vector<2x8x8xf32> to vector<2x8xf32>
    %95 = vector.shape_cast %94 : vector<2x8xf32> to vector<2x8x1xf32>
    %96 = tpu.reciprocal %95 {approx = true} : vector<2x8x1xf32> -> vector<2x8x1xf32>
    %97 = vector.broadcast %96 : vector<2x8x1xf32> to vector<2x8x8xf32>
    %98 = arith.mulf %93, %97 : vector<2x8x8xf32>
    %99 = arith.truncf %98 : vector<2x8x8xf32> to vector<2x8x8xbf16>
    "tpu.trace_start"() <{level = 10 : i32, message = "nls,nsd->nld"}> : () -> ()
    %cst_34 = arith.constant dense<0.000000e+00> : vector<2x8x8xf32>
    %100 = tpu.matmul %99, %87, %cst_34 {dimension_numbers = #tpu.dot_dimension_numbers<[2], [1], [1], [2], [0, 0, 0, 1, 1, 2], [0], [0]>} : vector<2x8x8xbf16>, vector<2x8x8xbf16>, vector<2x8x8xf32> -> vector<2x8x8xf32>
    "tpu.trace_stop"() : () -> ()
    %101 = tpu.concatenate %43, %62, %81, %100 in 2 : vector<2x8x8xf32>, vector<2x8x8xf32>, vector<2x8x8xf32>, vector<2x8x8xf32> -> vector<2x8x32xf32>
    %102 = vector.shape_cast %101 : vector<2x8x32xf32> to vector<16x32xf32>
    %103 = arith.truncf %102 : vector<16x32xf32> to vector<16x32xbf16>
    %c0_35 = arith.constant 0 : index
    %c0_36 = arith.constant 0 : index
    %104 = vector.load %arg8[%c0_35, %c0_36] : memref<32x32xbf16, #tpu.memory_space<vmem>>, vector<32x32xbf16>
    %cst_37 = arith.constant dense<0.000000e+00> : vector<16x32xf32>
    %105 = tpu.matmul %103, %104, %cst_37 {dimension_numbers = #tpu.dot_dimension_numbers<[1], [0], [0], [1], [0, 0, 1, 1], [], []>} : vector<16x32xbf16>, vector<32x32xbf16>, vector<16x32xf32> -> vector<16x32xf32>
    %c0_38 = arith.constant 0 : index
    %c0_39 = arith.constant 0 : index
    %106 = vector.load %arg9[%c0_38, %c0_39] : memref<1x32xf32, #tpu.memory_space<vmem>>, vector<1x32xf32>
    %107 = vector.broadcast %106 : vector<1x32xf32> to vector<16x32xf32>
    %108 = arith.addf %105, %107 : vector<16x32xf32>
    %109 = arith.addf %1, %108 : vector<16x32xf32>
    %cst_40 = arith.constant dense<0.000000e+00> : vector<16xf32>
    %110 = vector.multi_reduction <add>, %109, %cst_40 [1] : vector<16x32xf32> to vector<16xf32>
    %111 = vector.shape_cast %110 : vector<16xf32> to vector<16x1xf32>
    %cst_41 = arith.constant 3.200000e+01 : f32
    %112 = vector.broadcast %cst_41 : f32 to vector<16x1xf32>
    %113 = arith.divf %111, %112 : vector<16x1xf32>
    %114 = vector.broadcast %113 : vector<16x1xf32> to vector<16x32xf32>
    %115 = arith.subf %109, %114 : vector<16x32xf32>
    %116 = arith.mulf %115, %115 : vector<16x32xf32>
    %cst_42 = arith.constant dense<0.000000e+00> : vector<16xf32>
    %117 = vector.multi_reduction <add>, %116, %cst_42 [1] : vector<16x32xf32> to vector<16xf32>
    %118 = vector.shape_cast %117 : vector<16xf32> to vector<16x1xf32>
    %cst_43 = arith.constant 3.200000e+01 : f32
    %119 = vector.broadcast %cst_43 : f32 to vector<16x1xf32>
    %120 = arith.divf %118, %119 : vector<16x1xf32>
    %121 = vector.broadcast %113 : vector<16x1xf32> to vector<16x32xf32>
    %122 = arith.subf %109, %121 : vector<16x32xf32>
    %cst_44 = arith.constant 9.99999974E-6 : f32
    %123 = vector.broadcast %cst_44 : f32 to vector<16x1xf32>
    %124 = arith.addf %120, %123 : vector<16x1xf32>
    %125 = math.rsqrt %124 : vector<16x1xf32>
    %126 = vector.broadcast %125 : vector<16x1xf32> to vector<16x32xf32>
    %127 = arith.mulf %122, %126 : vector<16x32xf32>
    %c0_45 = arith.constant 0 : index
    %c0_46 = arith.constant 0 : index
    %128 = vector.load %arg10[%c0_45, %c0_46] : memref<1x32xf32, #tpu.memory_space<vmem>>, vector<1x32xf32>
    %129 = vector.broadcast %128 : vector<1x32xf32> to vector<16x32xf32>
    %130 = arith.mulf %127, %129 : vector<16x32xf32>
    %c0_47 = arith.constant 0 : index
    %c0_48 = arith.constant 0 : index
    %131 = vector.load %arg11[%c0_47, %c0_48] : memref<1x32xf32, #tpu.memory_space<vmem>>, vector<1x32xf32>
    %132 = vector.broadcast %131 : vector<1x32xf32> to vector<16x32xf32>
    %133 = arith.addf %130, %132 : vector<16x32xf32>
    %134 = arith.addf %133, %133 : vector<16x32xf32>
    %cst_49 = arith.constant dense<0.000000e+00> : vector<16xf32>
    %135 = vector.multi_reduction <add>, %134, %cst_49 [1] : vector<16x32xf32> to vector<16xf32>
    %136 = vector.shape_cast %135 : vector<16xf32> to vector<16x1xf32>
    %cst_50 = arith.constant 3.200000e+01 : f32
    %137 = vector.broadcast %cst_50 : f32 to vector<16x1xf32>
    %138 = arith.divf %136, %137 : vector<16x1xf32>
    %139 = vector.broadcast %138 : vector<16x1xf32> to vector<16x32xf32>
    %140 = arith.subf %134, %139 : vector<16x32xf32>
    %141 = arith.mulf %140, %140 : vector<16x32xf32>
    %cst_51 = arith.constant dense<0.000000e+00> : vector<16xf32>
    %142 = vector.multi_reduction <add>, %141, %cst_51 [1] : vector<16x32xf32> to vector<16xf32>
    %143 = vector.shape_cast %142 : vector<16xf32> to vector<16x1xf32>
    %cst_52 = arith.constant 3.200000e+01 : f32
    %144 = vector.broadcast %cst_52 : f32 to vector<16x1xf32>
    %145 = arith.divf %143, %144 : vector<16x1xf32>
    %146 = vector.broadcast %138 : vector<16x1xf32> to vector<16x32xf32>
    %147 = arith.subf %134, %146 : vector<16x32xf32>
    %cst_53 = arith.constant 9.99999974E-6 : f32
    %148 = vector.broadcast %cst_53 : f32 to vector<16x1xf32>
    %149 = arith.addf %145, %148 : vector<16x1xf32>
    %150 = math.rsqrt %149 : vector<16x1xf32>
    %151 = vector.broadcast %150 : vector<16x1xf32> to vector<16x32xf32>
    %152 = arith.mulf %147, %151 : vector<16x32xf32>
    %c0_54 = arith.constant 0 : index
    %c0_55 = arith.constant 0 : index
    %153 = vector.load %arg12[%c0_54, %c0_55] : memref<1x32xf32, #tpu.memory_space<vmem>>, vector<1x32xf32>
    %154 = vector.broadcast %153 : vector<1x32xf32> to vector<16x32xf32>
    %155 = arith.mulf %152, %154 : vector<16x32xf32>
    %c0_56 = arith.constant 0 : index
    %c0_57 = arith.constant 0 : index
    %156 = vector.load %arg13[%c0_56, %c0_57] : memref<1x32xf32, #tpu.memory_space<vmem>>, vector<1x32xf32>
    %157 = vector.broadcast %156 : vector<1x32xf32> to vector<16x32xf32>
    %158 = arith.addf %155, %157 : vector<16x32xf32>
    %159 = vector.shape_cast %158 : vector<16x32xf32> to vector<2x8x32xf32>
    %c0_58 = arith.constant 0 : index
    %c0_59 = arith.constant 0 : index
    %c0_60 = arith.constant 0 : index
    %160 = vector.load %arg14[%c0_58, %c0_59, %c0_60] : memref<2x8x32xf32, #tpu.memory_space<vmem>>, vector<2x8x32xf32>
    tpu.vector_store %arg14[%c0_58, %c0_59, %c0_60], %159 {strides = array<i32>} : memref<2x8x32xf32, #tpu.memory_space<vmem>>, vector<2x8x32xf32>,
    return
  }
}

</mosaic_0001>

<llo_original>
// kernel: attention_forward.1
$region0: #{attention_forward.1}
  #allocation0 [shape = 'u32[]', space=smem, size = 0x4, offset = 0x4, fixed_abs, tag = 'smem constant byte address 0x4 - core index']
  #allocation1 [shape = 'u32[144,128]{1,0:T(1,128)}', space=vmem, size = 0x12000, scoped, tag = 'internal scratch']
  %s0 = inlined_call_operand.vmem [shape: f32[2,8,32], index: 0, kind: input, shape index: {}]
  %s1 = inlined_call_operand.vmem [shape: f32[2,8,16], index: 1, kind: input, shape index: {}]
  %s2 = inlined_call_operand.vmem [shape: bf16[32,32], index: 2, kind: input, shape index: {}]
  %s3 = inlined_call_operand.vmem [shape: f32[1,32], index: 3, kind: input, shape index: {}]
  %s4 = inlined_call_operand.vmem [shape: bf16[16,32], index: 4, kind: input, shape index: {}]
  %s5 = inlined_call_operand.vmem [shape: f32[1,32], index: 5, kind: input, shape index: {}]
  %s6 = inlined_call_operand.vmem [shape: bf16[16,32], index: 6, kind: input, shape index: {}]
  %s7 = inlined_call_operand.vmem [shape: f32[1,32], index: 7, kind: input, shape index: {}]
  %s8 = inlined_call_operand.vmem [shape: bf16[32,32], index: 8, kind: input, shape index: {}]
  %s9 = inlined_call_operand.vmem [shape: f32[1,32], index: 9, kind: input, shape index: {}]
  %s10 = inlined_call_operand.vmem [shape: f32[1,32], index: 10, kind: input, shape index: {}]
  %s11 = inlined_call_operand.vmem [shape: f32[1,32], index: 11, kind: input, shape index: {}]
  %s12 = inlined_call_operand.vmem [shape: f32[1,32], index: 12, kind: input, shape index: {}]
  %s13 = inlined_call_operand.vmem [shape: f32[1,32], index: 13, kind: input, shape index: {}]
  %s14 = inlined_call_operand.vmem [shape: f32[2,8,32], index: 14, kind: output, shape index: {}]
  %s15 = sld [smem:[#allocation0]]
  $region66: #{attention_forward.1} parent=0
    _
  %s17 = ssub.s32 1, %s15
  %s18 = scalar_select 0, %s17, %s15
  // Predicated region
  $region2: #{attention_forward.1} parent=0 // pred_check
    _
  $region3: #{attention_forward.1} parent=0 // pred_check_branch
    %20 = sbr.rel (0) target = $region5
  $region4: #{attention_forward.1} parent=0 // pred_region
    _
  $region5: #{attention_forward.1} parent=0 // pred_fallthru
    _
  // Predicated region
  $region6: #{attention_forward.1} parent=0 // pred_check
    _
  $region7: #{attention_forward.1} parent=0 // pred_check_branch
    %22 = sbr.rel (0) target = $region9
  $region8: #{attention_forward.1} parent=0 // pred_region
    _
  $region9: #{attention_forward.1} parent=0 // pred_fallthru
    _
  // Predicated region
  $region10: #{attention_forward.1} parent=0 // pred_check
    _
  $region11: #{attention_forward.1} parent=0 // pred_check_branch
    %24 = sbr.rel (0) target = $region13
  $region12: #{attention_forward.1} parent=0 // pred_region
    _
  $region13: #{attention_forward.1} parent=0 // pred_fallthru
    _
  // Predicated region
  $region14: #{attention_forward.1} parent=0 // pred_check
    _
  $region15: #{attention_forward.1} parent=0 // pred_check_branch
    %26 = sbr.rel (0) target = $region17
  $region16: #{attention_forward.1} parent=0 // pred_region
    _
  $region17: #{attention_forward.1} parent=0 // pred_fallthru
    _
  // Predicated region
  $region18: #{attention_forward.1} parent=0 // pred_check
    _
  $region19: #{attention_forward.1} parent=0 // pred_check_branch
    %28 = sbr.rel (0) target = $region21
  $region20: #{attention_forward.1} parent=0 // pred_region
    _
  $region21: #{attention_forward.1} parent=0 // pred_fallthru
    _
  // Predicated region
  $region22: #{attention_forward.1} parent=0 // pred_check
    _
  $region23: #{attention_forward.1} parent=0 // pred_check_branch
    %30 = sbr.rel (0) target = $region25
  $region24: #{attention_forward.1} parent=0 // pred_region
    _
  $region25: #{attention_forward.1} parent=0 // pred_fallthru
    _
  // Predicated region
  $region26: #{attention_forward.1} parent=0 // pred_check
    _
  $region27: #{attention_forward.1} parent=0 // pred_check_branch
    %32 = sbr.rel (0) target = $region29
  $region28: #{attention_forward.1} parent=0 // pred_region
    _
  $region29: #{attention_forward.1} parent=0 // pred_fallthru
    _
  // Predicated region
  $region30: #{attention_forward.1} parent=0 // pred_check
    _
  $region31: #{attention_forward.1} parent=0 // pred_check_branch
    %34 = sbr.rel (0) target = $region33
  $region32: #{attention_forward.1} parent=0 // pred_region
    _
  $region33: #{attention_forward.1} parent=0 // pred_fallthru
    _
  // Predicated region
  $region34: #{attention_forward.1} parent=0 // pred_check
    _
  $region35: #{attention_forward.1} parent=0 // pred_check_branch
    %36 = sbr.rel (0) target = $region37
  $region36: #{attention_forward.1} parent=0 // pred_region
    _
  $region37: #{attention_forward.1} parent=0 // pred_fallthru
    _
  // Predicated region
  $region38: #{attention_forward.1} parent=0 // pred_check
    _
  $region39: #{attention_forward.1} parent=0 // pred_check_branch
    %38 = sbr.rel (0) target = $region41
  $region40: #{attention_forward.1} parent=0 // pred_region
    _
  $region41: #{attention_forward.1} parent=0 // pred_fallthru
    _
  // Predicated region
  $region42: #{attention_forward.1} parent=0 // pred_check
    _
  $region43: #{attention_forward.1} parent=0 // pred_check_branch
    %40 = sbr.rel (0) target = $region45
  $region44: #{attention_forward.1} parent=0 // pred_region
    _
  $region45: #{attention_forward.1} parent=0 // pred_fallthru
    _
  // Predicated region
  $region46: #{attention_forward.1} parent=0 // pred_check
    _
  $region47: #{attention_forward.1} parent=0 // pred_check_branch
    %42 = sbr.rel (0) target = $region49
  $region48: #{attention_forward.1} parent=0 // pred_region
    _
  $region49: #{attention_forward.1} parent=0 // pred_fallthru
    _
  // Predicated region
  $region50: #{attention_forward.1} parent=0 // pred_check
    _
  $region51: #{attention_forward.1} parent=0 // pred_check_branch
    %44 = sbr.rel (0) target = $region53
  $region52: #{attention_forward.1} parent=0 // pred_region
    _
  $region53: #{attention_forward.1} parent=0 // pred_fallthru
    _
  // Predicated region
  $region54: #{attention_forward.1} parent=0 // pred_check
    _
  $region55: #{attention_forward.1} parent=0 // pred_check_branch
    %46 = sbr.rel (0) target = $region57
  $region56: #{attention_forward.1} parent=0 // pred_region
    _
  $region57: #{attention_forward.1} parent=0 // pred_fallthru
    _
  %v48 = vld [vmem:[%s0] sm:$0xff]
  %v49 = vld [vmem:[%s0 + $0x8] sm:$0xff]
  %v50 = vld [vmem:[%s1] sm:$0xff]
  %v51 = vld [vmem:[%s1 + $0x8] sm:$0xff]
  %v52 = vpack.c.bf16 %v49, %v48
  %v53 = vld [vmem:[%s2] sm:$0xf]
  %v54 = vld [vmem:[%s2 + $0x4] sm:$0xf]
  %v55 = vld [vmem:[%s2 + $0x8] sm:$0xf]
  %v56 = vld [vmem:[%s2 + $0xc] sm:$0xf]
  %v57 = vld [vmem:[%s3] sm:$0x1]
  %v59 = vlaneseq
  %v60 = vshrl.u32 %v59, 7
  %v61 = vsub.s32 0, %v60
  %v62 = vrot.slane %v57, %v61
  %v68 = vunpack.c.l.b16 %v53
  %v69 = vunpack.c.l.b16 %v54
  %v70 = vunpack.c.l.b16 %v55
  %v71 = vunpack.c.l.b16 %v56
  %v72 = vpack.c.b16 %v69, %v68
  %v73 = vpack.c.b16 %v71, %v70
  %vm76 = vcmask 261120
  %v78 = vsel %vm76, %v52, 0
  %80 = vmatprep.subr.bf16.mxu0 0
  %81 = vmatpush1.bf16.msra.mxu0 0
  %82 = vmatprep.subr.bf16.mxu0 0
  %83 = vmatpush1.bf16.msra.mxu0 0
  %84 = vmatprep.subr.bf16.mxu0 0
  %85 = vmatpush1.bf16.msra.mxu0 0
  %86 = vmatprep.subr.bf16.mxu0 0
  %87 = vmatpush1.bf16.msra.mxu0 0
  %88 = vmatprep.subr.bf16.mxu0 0
  %89 = vmatpush1.bf16.msra.mxu0 0
  %90 = vmatprep.subr.bf16.mxu0 0
  %91 = vmatpush1.bf16.msra.mxu0 0
  %92 = vmatprep.subr.bf16.mxu0 0
  %93 = vmatpush1.bf16.msra.mxu0 %v73
  %94 = vmatprep.subr.bf16.mxu0 0
  %95 = vmatpush1.bf16.msra.mxu0 %v72
  %96 = vmatprep.subr.bf16.mxu0 0
  %97 = vmatpush2.bf16.msra.mxu0 0
  %98 = vmatprep.subr.bf16.mxu0 0
  %99 = vmatpush2.bf16.msra.mxu0 0
  %100 = vmatprep.subr.bf16.mxu0 0
  %101 = vmatpush2.bf16.msra.mxu0 0
  %102 = vmatprep.subr.bf16.mxu0 0
  %103 = vmatpush2.bf16.msra.mxu0 0
  %104 = vmatprep.subr.bf16.mxu0 0
  %105 = vmatpush2.bf16.msra.mxu0 0
  %106 = vmatprep.subr.bf16.mxu0 0
  %107 = vmatpush2.bf16.msra.mxu0 0
  %108 = vmatprep.subr.bf16.mxu0 0
  %109 = vmatpush2.bf16.msra.mxu0 0
  %110 = vmatprep.subr.bf16.mxu0 0
  %111 = vmatpush2.bf16.msra.mxu0 0
  %112 = vmatprep.mubr.bf16.mxu0 0
  %113 = vmatmul.mubr.bf16.gmra.mxu0 %v78
  %v114 = vpop.f32.mrf.mxu0
  %v115 = vadd.f32 %v62, %v114
  %v116 = vpop.f32.mrf.mxu0
  %v117 = vpop.f32.mrf.mxu0
  %v118 = vadd.f32 %v62, %v117
  %v119 = vpop.f32.mrf.mxu0
  %120 = vdwg.mxu0
  %v121 = vpack.c.bf16 %v51, %v50
  %v122 = vld [vmem:[%s4] sm:$0xf]
  %v123 = vld [vmem:[%s4 + $0x4] sm:$0xf]
  %v124 = vld [vmem:[%s5] sm:$0x1]
  %v126 = vlaneseq
  %v127 = vshrl.u32 %v126, 7
  %v128 = vsub.s32 0, %v127
  %v129 = vrot.slane %v124, %v128
  %v133 = vunpack.c.l.b16 %v122
  %v134 = vunpack.c.l.b16 %v123
  %v135 = vpack.c.b16 %v134, %v133
  %vm137 = vcmask 130048
  %v139 = vsel %vm137, %v121, 0
  %141 = vmatprep.subr.bf16.mxu0 0
  %142 = vmatpush1.bf16.msra.mxu0 0
  %143 = vmatprep.subr.bf16.mxu0 0
  %144 = vmatpush1.bf16.msra.mxu0 0
  %145 = vmatprep.subr.bf16.mxu0 0
  %146 = vmatpush1.bf16.msra.mxu0 0
  %147 = vmatprep.subr.bf16.mxu0 0
  %148 = vmatpush1.bf16.msra.mxu0 0
  %149 = vmatprep.subr.bf16.mxu0 0
  %150 = vmatpush1.bf16.msra.mxu0 0
  %151 = vmatprep.subr.bf16.mxu0 0
  %152 = vmatpush1.bf16.msra.mxu0 0
  %153 = vmatprep.subr.bf16.mxu0 0
  %154 = vmatpush1.bf16.msra.mxu0 0
  %155 = vmatprep.subr.bf16.mxu0 0
  %156 = vmatpush1.bf16.msra.mxu0 %v135
  %157 = vmatprep.subr.bf16.mxu0 0
  %158 = vmatpush2.bf16.msra.mxu0 0
  %159 = vmatprep.subr.bf16.mxu0 0
  %160 = vmatpush2.bf16.msra.mxu0 0
  %161 = vmatprep.subr.bf16.mxu0 0
  %162 = vmatpush2.bf16.msra.mxu0 0
  %163 = vmatprep.subr.bf16.mxu0 0
  %164 = vmatpush2.bf16.msra.mxu0 0
  %165 = vmatprep.subr.bf16.mxu0 0
  %166 = vmatpush2.bf16.msra.mxu0 0
  %167 = vmatprep.subr.bf16.mxu0 0
  %168 = vmatpush2.bf16.msra.mxu0 0
  %169 = vmatprep.subr.bf16.mxu0 0
  %170 = vmatpush2.bf16.msra.mxu0 0
  %171 = vmatprep.subr.bf16.mxu0 0
  %172 = vmatpush2.bf16.msra.mxu0 0
  %173 = vmatprep.mubr.bf16.mxu0 0
  %174 = vmatmul.mubr.bf16.gmra.mxu0 %v139
  %v175 = vpop.f32.mrf.mxu0
  %v176 = vadd.f32 %v129, %v175
  %v177 = vpop.f32.mrf.mxu0
  %v178 = vpop.f32.mrf.mxu0
  %v179 = vadd.f32 %v129, %v178
  %v180 = vpop.f32.mrf.mxu0
  %181 = vdwg.mxu0
  %v182 = vld [vmem:[%s6] sm:$0xf]
  %v183 = vld [vmem:[%s6 + $0x4] sm:$0xf]
  %v184 = vld [vmem:[%s7] sm:$0x1]
  %v186 = vlaneseq
  %v187 = vshrl.u32 %v186, 7
  %v188 = vsub.s32 0, %v187
  %v189 = vrot.slane %v184, %v188
  %v193 = vunpack.c.l.b16 %v182
  %v194 = vunpack.c.l.b16 %v183
  %v195 = vpack.c.b16 %v194, %v193
  %197 = vmatprep.subr.bf16.mxu0 0
  %198 = vmatpush1.bf16.msra.mxu0 0
  %199 = vmatprep.subr.bf16.mxu0 0
  %200 = vmatpush1.bf16.msra.mxu0 0
  %201 = vmatprep.subr.bf16.mxu0 0
  %202 = vmatpush1.bf16.msra.mxu0 0
  %203 = vmatprep.subr.bf16.mxu0 0
  %204 = vmatpush1.bf16.msra.mxu0 0
  %205 = vmatprep.subr.bf16.mxu0 0
  %206 = vmatpush1.bf16.msra.mxu0 0
  %207 = vmatprep.subr.bf16.mxu0 0
  %208 = vmatpush1.bf16.msra.mxu0 0
  %209 = vmatprep.subr.bf16.mxu0 0
  %210 = vmatpush1.bf16.msra.mxu0 0
  %211 = vmatprep.subr.bf16.mxu0 0
  %212 = vmatpush1.bf16.msra.mxu0 %v195
  %213 = vmatprep.subr.bf16.mxu0 0
  %214 = vmatpush2.bf16.msra.mxu0 0
  %215 = vmatprep.subr.bf16.mxu0 0
  %216 = vmatpush2.bf16.msra.mxu0 0
  %217 = vmatprep.subr.bf16.mxu0 0
  %218 = vmatpush2.bf16.msra.mxu0 0
  %219 = vmatprep.subr.bf16.mxu0 0
  %220 = vmatpush2.bf16.msra.mxu0 0
  %221 = vmatprep.subr.bf16.mxu0 0
  %222 = vmatpush2.bf16.msra.mxu0 0
  %223 = vmatprep.subr.bf16.mxu0 0
  %224 = vmatpush2.bf16.msra.mxu0 0
  %225 = vmatprep.subr.bf16.mxu0 0
  %226 = vmatpush2.bf16.msra.mxu0 0
  %227 = vmatprep.subr.bf16.mxu0 0
  %228 = vmatpush2.bf16.msra.mxu0 0
  %229 = vmatprep.mubr.bf16.mxu0 0
  %230 = vmatmul.mubr.bf16.gmra.mxu0 %v139
  %v231 = vpop.f32.mrf.mxu0
  %v232 = vadd.f32 %v189, %v231
  %v233 = vpop.f32.mrf.mxu0
  %v234 = vpop.f32.mrf.mxu0
  %v235 = vadd.f32 %v189, %v234
  %v236 = vpop.f32.mrf.mxu0
  %237 = vdwg.mxu0
  %v238 = vpack.c.bf16 %v115, %v115
  %v239 = vpack.c.bf16 %v118, %v118
  %v240 = vpack.c.bf16 %v176, %v176
  %v241 = vpack.c.bf16 %v179, %v179
  %v242 = vpack.c.bf16 %v232, %v232
  %v243 = vpack.c.bf16 %v235, %v235
  %vm244 = vcmask 64512
  %v246 = vsel %vm244, %v238, 0
  %v249 = vsel %vm244, %v240, 0
  %251 = vmatprep.subr.bf16.mxu0 0
  %252 = vmatpush1.bf16.xpose.msra.mxu0 0
  %253 = vmatprep.subr.bf16.mxu0 0
  %254 = vmatpush1.bf16.xpose.msra.mxu0 0
  %255 = vmatprep.subr.bf16.mxu0 0
  %256 = vmatpush1.bf16.xpose.msra.mxu0 0
  %257 = vmatprep.subr.bf16.mxu0 0
  %258 = vmatpush1.bf16.xpose.msra.mxu0 0
  %259 = vmatprep.subr.bf16.mxu0 0
  %260 = vmatpush1.bf16.xpose.msra.mxu0 0
  %261 = vmatprep.subr.bf16.mxu0 0
  %262 = vmatpush1.bf16.xpose.msra.mxu0 0
  %263 = vmatprep.subr.bf16.mxu0 0
  %264 = vmatpush1.bf16.xpose.msra.mxu0 0
  %265 = vmatprep.subr.bf16.mxu0 0
  %266 = vmatpush1.bf16.xpose.msra.mxu0 %v249
  %267 = vmatprep.subr.bf16.mxu0 0
  %268 = vmatpush2.bf16.xpose.msra.mxu0 0
  %269 = vmatprep.subr.bf16.mxu0 0
  %270 = vmatpush2.bf16.xpose.msra.mxu0 0
  %271 = vmatprep.subr.bf16.mxu0 0
  %272 = vmatpush2.bf16.xpose.msra.mxu0 0
  %273 = vmatprep.subr.bf16.mxu0 0
  %274 = vmatpush2.bf16.xpose.msra.mxu0 0
  %275 = vmatprep.subr.bf16.mxu0 0
  %276 = vmatpush2.bf16.xpose.msra.mxu0 0
  %277 = vmatprep.subr.bf16.mxu0 0
  %278 = vmatpush2.bf16.xpose.msra.mxu0 0
  %279 = vmatprep.subr.bf16.mxu0 0
  %280 = vmatpush2.bf16.xpose.msra.mxu0 0
  %281 = vmatprep.subr.bf16.mxu0 0
  %282 = vmatpush2.bf16.xpose.msra.mxu0 0
  %283 = vmatprep.mubr.bf16.mxu0 0
  %284 = vmatmul.mubr.bf16.gmra.mxu0 %v246
  %v285 = vpop.f32.mrf.mxu0
  %v286 = vadd.f32 0.0, %v285
  %v287 = vpop.f32.mrf.mxu0
  %v288 = vpop.f32.mrf.mxu0
  %v289 = vpop.f32.mrf.mxu0
  %290 = vdwg.mxu0
  %v292 = vsel %vm244, %v239, 0
  %v295 = vsel %vm244, %v241, 0
  %297 = vmatprep.subr.bf16.mxu0 0
  %298 = vmatpush1.bf16.xpose.msra.mxu0 0
  %299 = vmatprep.subr.bf16.mxu0 0
  %300 = vmatpush1.bf16.xpose.msra.mxu0 0
  %301 = vmatprep.subr.bf16.mxu0 0
  %302 = vmatpush1.bf16.xpose.msra.mxu0 0
  %303 = vmatprep.subr.bf16.mxu0 0
  %304 = vmatpush1.bf16.xpose.msra.mxu0 0
  %305 = vmatprep.subr.bf16.mxu0 0
  %306 = vmatpush1.bf16.xpose.msra.mxu0 0
  %307 = vmatprep.subr.bf16.mxu0 0
  %308 = vmatpush1.bf16.xpose.msra.mxu0 0
  %309 = vmatprep.subr.bf16.mxu0 0
  %310 = vmatpush1.bf16.xpose.msra.mxu0 0
  %311 = vmatprep.subr.bf16.mxu0 0
  %312 = vmatpush1.bf16.xpose.msra.mxu0 %v295
  %313 = vmatprep.subr.bf16.mxu0 0
  %314 = vmatpush2.bf16.xpose.msra.mxu0 0
  %315 = vmatprep.subr.bf16.mxu0 0
  %316 = vmatpush2.bf16.xpose.msra.mxu0 0
  %317 = vmatprep.subr.bf16.mxu0 0
  %318 = vmatpush2.bf16.xpose.msra.mxu0 0
  %319 = vmatprep.subr.bf16.mxu0 0
  %320 = vmatpush2.bf16.xpose.msra.mxu0 0
  %321 = vmatprep.subr.bf16.mxu0 0
  %322 = vmatpush2.bf16.xpose.msra.mxu0 0
  %323 = vmatprep.subr.bf16.mxu0 0
  %324 = vmatpush2.bf16.xpose.msra.mxu0 0
  %325 = vmatprep.subr.bf16.mxu0 0
  %326 = vmatpush2.bf16.xpose.msra.mxu0 0
  %327 = vmatprep.subr.bf16.mxu0 0
  %328 = vmatpush2.bf16.xpose.msra.mxu0 0
  %329 = vmatprep.mubr.bf16.mxu0 0
  %330 = vmatmul.mubr.bf16.gmra.mxu0 %v292
  %v331 = vpop.f32.mrf.mxu0
  %v332 = vadd.f32 0.0, %v331
  %v333 = vpop.f32.mrf.mxu0
  %v334 = vpop.f32.mrf.mxu0
  %v335 = vpop.f32.mrf.mxu0
  %336 = vdwg.mxu0
  %v337 = vsel %vm244, %v286, -inf
  %338 = vmax.xlane.f32.xlu0 %v337
  %v339 = vpop.xlane.xlu0 %338
  %v340 = vsel %vm244, %v332, -inf
  %341 = vmax.xlane.f32.xlu0 %v340
  %v342 = vpop.xlane.xlu0 %341
  %v343 = vsub.f32 %v286, %v339
  %v344 = vsub.f32 %v332, %v342
  %v345 = vmul.f32 %v343, 1.442695
  %v346 = vpow.pop %v345
  %v347 = vmul.f32 %v344, 1.442695
  %v348 = vpow.pop %v347
  %v349 = vsel %vm244, %v346, 0.0
  %350 = vadd.xlane.f32.xlu0 %v349
  %v351 = vpop.xlane.xlu0 %350
  %v352 = vsel %vm244, %v348, 0.0
  %353 = vadd.xlane.f32.xlu0 %v352
  %v354 = vpop.xlane.xlu0 %353
  %v355 = vrcp.pop %v351
  %v356 = vrcp.pop %v354
  %v357 = vmul.f32 %v346, %v355
  %v358 = vmul.f32 %v348, %v356
  %v359 = vpack.c.bf16 %v357, %v357
  %v360 = vpack.c.bf16 %v358, %v358
  %v362 = vsel %vm244, %v359, 0
  %vm364 = vcmask 1043456
  %v366 = vsel %vm364, %v242, 0
  %368 = vmatprep.subr.bf16.mxu0 0
  %369 = vmatpush1.bf16.msra.mxu0 0
  %370 = vmatprep.subr.bf16.mxu0 0
  %371 = vmatpush1.bf16.msra.mxu0 0
  %372 = vmatprep.subr.bf16.mxu0 0
  %373 = vmatpush1.bf16.msra.mxu0 0
  %374 = vmatprep.subr.bf16.mxu0 0
  %375 = vmatpush1.bf16.msra.mxu0 0
  %376 = vmatprep.subr.bf16.mxu0 0
  %377 = vmatpush1.bf16.msra.mxu0 0
  %378 = vmatprep.subr.bf16.mxu0 0
  %379 = vmatpush1.bf16.msra.mxu0 0
  %380 = vmatprep.subr.bf16.mxu0 0
  %381 = vmatpush1.bf16.msra.mxu0 0
  %382 = vmatprep.subr.bf16.mxu0 0
  %383 = vmatpush1.bf16.msra.mxu0 %v366
  %384 = vmatprep.subr.bf16.mxu0 0
  %385 = vmatpush2.bf16.msra.mxu0 0
  %386 = vmatprep.subr.bf16.mxu0 0
  %387 = vmatpush2.bf16.msra.mxu0 0
  %388 = vmatprep.subr.bf16.mxu0 0
  %389 = vmatpush2.bf16.msra.mxu0 0
  %390 = vmatprep.subr.bf16.mxu0 0
  %391 = vmatpush2.bf16.msra.mxu0 0
  %392 = vmatprep.subr.bf16.mxu0 0
  %393 = vmatpush2.bf16.msra.mxu0 0
  %394 = vmatprep.subr.bf16.mxu0 0
  %395 = vmatpush2.bf16.msra.mxu0 0
  %396 = vmatprep.subr.bf16.mxu0 0
  %397 = vmatpush2.bf16.msra.mxu0 0
  %398 = vmatprep.subr.bf16.mxu0 0
  %399 = vmatpush2.bf16.msra.mxu0 0
  %400 = vmatprep.mubr.bf16.mxu0 0
  %401 = vmatmul.mubr.bf16.gmra.mxu0 %v362
  %v402 = vpop.f32.mrf.mxu0
  %v403 = vadd.f32 0.0, %v402
  %v404 = vpop.f32.mrf.mxu0
  %v405 = vpop.f32.mrf.mxu0
  %v406 = vpop.f32.mrf.mxu0
  %407 = vdwg.mxu0
  %v409 = vsel %vm244, %v360, 0
  %v412 = vsel %vm364, %v243, 0
  %414 = vmatprep.subr.bf16.mxu0 0
  %415 = vmatpush1.bf16.msra.mxu0 0
  %416 = vmatprep.subr.bf16.mxu0 0
  %417 = vmatpush1.bf16.msra.mxu0 0
  %418 = vmatprep.subr.bf16.mxu0 0
  %419 = vmatpush1.bf16.msra.mxu0 0
  %420 = vmatprep.subr.bf16.mxu0 0
  %421 = vmatpush1.bf16.msra.mxu0 0
  %422 = vmatprep.subr.bf16.mxu0 0
  %423 = vmatpush1.bf16.msra.mxu0 0
  %424 = vmatprep.subr.bf16.mxu0 0
  %425 = vmatpush1.bf16.msra.mxu0 0
  %426 = vmatprep.subr.bf16.mxu0 0
  %427 = vmatpush1.bf16.msra.mxu0 0
  %428 = vmatprep.subr.bf16.mxu0 0
  %429 = vmatpush1.bf16.msra.mxu0 %v412
  %430 = vmatprep.subr.bf16.mxu0 0
  %431 = vmatpush2.bf16.msra.mxu0 0
  %432 = vmatprep.subr.bf16.mxu0 0
  %433 = vmatpush2.bf16.msra.mxu0 0
  %434 = vmatprep.subr.bf16.mxu0 0
  %435 = vmatpush2.bf16.msra.mxu0 0
  %436 = vmatprep.subr.bf16.mxu0 0
  %437 = vmatpush2.bf16.msra.mxu0 0
  %438 = vmatprep.subr.bf16.mxu0 0
  %439 = vmatpush2.bf16.msra.mxu0 0
  %440 = vmatprep.subr.bf16.mxu0 0
  %441 = vmatpush2.bf16.msra.mxu0 0
  %442 = vmatprep.subr.bf16.mxu0 0
  %443 = vmatpush2.bf16.msra.mxu0 0
  %444 = vmatprep.subr.bf16.mxu0 0
  %445 = vmatpush2.bf16.msra.mxu0 0
  %446 = vmatprep.mubr.bf16.mxu0 0
  %447 = vmatmul.mubr.bf16.gmra.mxu0 %v409
  %v448 = vpop.f32.mrf.mxu0
  %v449 = vadd.f32 0.0, %v448
  %v450 = vpop.f32.mrf.mxu0
  %v451 = vpop.f32.mrf.mxu0
  %v452 = vpop.f32.mrf.mxu0
  %453 = vdwg.mxu0
  %455 = vrot.lane.b32.xlu0 %v238, 120
  %v456 = vpop.permute.xlu0 %455
  %458 = vrot.lane.b32.xlu0 %v240, 120
  %v459 = vpop.permute.xlu0 %458
  %v461 = vsel %vm244, %v456, 0
  %v464 = vsel %vm244, %v459, 0
  %466 = vmatprep.subr.bf16.mxu0 0
  %467 = vmatpush1.bf16.xpose.msra.mxu0 0
  %468 = vmatprep.subr.bf16.mxu0 0
  %469 = vmatpush1.bf16.xpose.msra.mxu0 0
  %470 = vmatprep.subr.bf16.mxu0 0
  %471 = vmatpush1.bf16.xpose.msra.mxu0 0
  %472 = vmatprep.subr.bf16.mxu0 0
  %473 = vmatpush1.bf16.xpose.msra.mxu0 0
  %474 = vmatprep.subr.bf16.mxu0 0
  %475 = vmatpush1.bf16.xpose.msra.mxu0 0
  %476 = vmatprep.subr.bf16.mxu0 0
  %477 = vmatpush1.bf16.xpose.msra.mxu0 0
  %478 = vmatprep.subr.bf16.mxu0 0
  %479 = vmatpush1.bf16.xpose.msra.mxu0 0
  %480 = vmatprep.subr.bf16.mxu0 0
  %481 = vmatpush1.bf16.xpose.msra.mxu0 %v464
  %482 = vmatprep.subr.bf16.mxu0 0
  %483 = vmatpush2.bf16.xpose.msra.mxu0 0
  %484 = vmatprep.subr.bf16.mxu0 0
  %485 = vmatpush2.bf16.xpose.msra.mxu0 0
  %486 = vmatprep.subr.bf16.mxu0 0
  %487 = vmatpush2.bf16.xpose.msra.mxu0 0
  %488 = vmatprep.subr.bf16.mxu0 0
  %489 = vmatpush2.bf16.xpose.msra.mxu0 0
  %490 = vmatprep.subr.bf16.mxu0 0
  %491 = vmatpush2.bf16.xpose.msra.mxu0 0
  %492 = vmatprep.subr.bf16.mxu0 0
  %493 = vmatpush2.bf16.xpose.msra.mxu0 0
  %494 = vmatprep.subr.bf16.mxu0 0
  %495 = vmatpush2.bf16.xpose.msra.mxu0 0
  %496 = vmatprep.subr.bf16.mxu0 0
  %497 = vmatpush2.bf16.xpose.msra.mxu0 0
  %498 = vmatprep.mubr.bf16.mxu0 0
  %499 = vmatmul.mubr.bf16.gmra.mxu0 %v461
  %v500 = vpop.f32.mrf.mxu0
  %v501 = vadd.f32 0.0, %v500
  %v502 = vpop.f32.mrf.mxu0
  %v503 = vpop.f32.mrf.mxu0
  %v504 = vpop.f32.mrf.mxu0
  %505 = vdwg.mxu0
  %507 = vrot.lane.b32.xlu0 %v239, 120
  %v508 = vpop.permute.xlu0 %507
  %510 = vrot.lane.b32.xlu0 %v241, 120
  %v511 = vpop.permute.xlu0 %510
  %v513 = vsel %vm244, %v508, 0
  %v516 = vsel %vm244, %v511, 0
  %518 = vmatprep.subr.bf16.mxu0 0
  %519 = vmatpush1.bf16.xpose.msra.mxu0 0
  %520 = vmatprep.subr.bf16.mxu0 0
  %521 = vmatpush1.bf16.xpose.msra.mxu0 0
  %522 = vmatprep.subr.bf16.mxu0 0
  %523 = vmatpush1.bf16.xpose.msra.mxu0 0
  %524 = vmatprep.subr.bf16.mxu0 0
  %525 = vmatpush1.bf16.xpose.msra.mxu0 0
  %526 = vmatprep.subr.bf16.mxu0 0
  %527 = vmatpush1.bf16.xpose.msra.mxu0 0
  %528 = vmatprep.subr.bf16.mxu0 0
  %529 = vmatpush1.bf16.xpose.msra.mxu0 0
  %530 = vmatprep.subr.bf16.mxu0 0
  %531 = vmatpush1.bf16.xpose.msra.mxu0 0
  %532 = vmatprep.subr.bf16.mxu0 0
  %533 = vmatpush1.bf16.xpose.msra.mxu0 %v516
  %534 = vmatprep.subr.bf16.mxu0 0
  %535 = vmatpush2.bf16.xpose.msra.mxu0 0
  %536 = vmatprep.subr.bf16.mxu0 0
  %537 = vmatpush2.bf16.xpose.msra.mxu0 0
  %538 = vmatprep.subr.bf16.mxu0 0
  %539 = vmatpush2.bf16.xpose.msra.mxu0 0
  %540 = vmatprep.subr.bf16.mxu0 0
  %541 = vmatpush2.bf16.xpose.msra.mxu0 0
  %542 = vmatprep.subr.bf16.mxu0 0
  %543 = vmatpush2.bf16.xpose.msra.mxu0 0
  %544 = vmatprep.subr.bf16.mxu0 0
  %545 = vmatpush2.bf16.xpose.msra.mxu0 0
  %546 = vmatprep.subr.bf16.mxu0 0
  %547 = vmatpush2.bf16.xpose.msra.mxu0 0
  %548 = vmatprep.subr.bf16.mxu0 0
  %549 = vmatpush2.bf16.xpose.msra.mxu0 0
  %550 = vmatprep.mubr.bf16.mxu0 0
  %551 = vmatmul.mubr.bf16.gmra.mxu0 %v513
  %v552 = vpop.f32.mrf.mxu0
  %v553 = vadd.f32 0.0, %v552
  %v554 = vpop.f32.mrf.mxu0
  %v555 = vpop.f32.mrf.mxu0
  %v556 = vpop.f32.mrf.mxu0
  %557 = vdwg.mxu0
  %v558 = vsel %vm244, %v501, -inf
  %559 = vmax.xlane.f32.xlu0 %v558
  %v560 = vpop.xlane.xlu0 %559
  %v561 = vsel %vm244, %v553, -inf
  %562 = vmax.xlane.f32.xlu0 %v561
  %v563 = vpop.xlane.xlu0 %562
  %v564 = vsub.f32 %v501, %v560
  %v565 = vsub.f32 %v553, %v563
  %v566 = vmul.f32 %v564, 1.442695
  %v567 = vpow.pop %v566
  %v568 = vmul.f32 %v565, 1.442695
  %v569 = vpow.pop %v568
  %v570 = vsel %vm244, %v567, 0.0
  %571 = vadd.xlane.f32.xlu0 %v570
  %v572 = vpop.xlane.xlu0 %571
  %v573 = vsel %vm244, %v569, 0.0
  %574 = vadd.xlane.f32.xlu0 %v573
  %v575 = vpop.xlane.xlu0 %574
  %v576 = vrcp.pop %v572
  %v577 = vrcp.pop %v575
  %v578 = vmul.f32 %v567, %v576
  %v579 = vmul.f32 %v569, %v577
  %v580 = vpack.c.bf16 %v578, %v578
  %v581 = vpack.c.bf16 %v579, %v579
  %583 = vrot.lane.b32.xlu0 %v242, 120
  %v584 = vpop.permute.xlu0 %583
  %v586 = vsel %vm244, %v580, 0
  %v589 = vsel %vm364, %v584, 0
  %591 = vmatprep.subr.bf16.mxu0 0
  %592 = vmatpush1.bf16.msra.mxu0 0
  %593 = vmatprep.subr.bf16.mxu0 0
  %594 = vmatpush1.bf16.msra.mxu0 0
  %595 = vmatprep.subr.bf16.mxu0 0
  %596 = vmatpush1.bf16.msra.mxu0 0
  %597 = vmatprep.subr.bf16.mxu0 0
  %598 = vmatpush1.bf16.msra.mxu0 0
  %599 = vmatprep.subr.bf16.mxu0 0
  %600 = vmatpush1.bf16.msra.mxu0 0
  %601 = vmatprep.subr.bf16.mxu0 0
  %602 = vmatpush1.bf16.msra.mxu0 0
  %603 = vmatprep.subr.bf16.mxu0 0
  %604 = vmatpush1.bf16.msra.mxu0 0
  %605 = vmatprep.subr.bf16.mxu0 0
  %606 = vmatpush1.bf16.msra.mxu0 %v589
  %607 = vmatprep.subr.bf16.mxu0 0
  %608 = vmatpush2.bf16.msra.mxu0 0
  %609 = vmatprep.subr.bf16.mxu0 0
  %610 = vmatpush2.bf16.msra.mxu0 0
  %611 = vmatprep.subr.bf16.mxu0 0
  %612 = vmatpush2.bf16.msra.mxu0 0
  %613 = vmatprep.subr.bf16.mxu0 0
  %614 = vmatpush2.bf16.msra.mxu0 0
  %615 = vmatprep.subr.bf16.mxu0 0
  %616 = vmatpush2.bf16.msra.mxu0 0
  %617 = vmatprep.subr.bf16.mxu0 0
  %618 = vmatpush2.bf16.msra.mxu0 0
  %619 = vmatprep.subr.bf16.mxu0 0
  %620 = vmatpush2.bf16.msra.mxu0 0
  %621 = vmatprep.subr.bf16.mxu0 0
  %622 = vmatpush2.bf16.msra.mxu0 0
  %623 = vmatprep.mubr.bf16.mxu0 0
  %624 = vmatmul.mubr.bf16.gmra.mxu0 %v586
  %v625 = vpop.f32.mrf.mxu0
  %v626 = vadd.f32 0.0, %v625
  %v627 = vpop.f32.mrf.mxu0
  %v628 = vpop.f32.mrf.mxu0
  %v629 = vpop.f32.mrf.mxu0
  %630 = vdwg.mxu0
  %632 = vrot.lane.b32.xlu0 %v243, 120
  %v633 = vpop.permute.xlu0 %632
  %v635 = vsel %vm244, %v581, 0
  %v638 = vsel %vm364, %v633, 0
  %640 = vmatprep.subr.bf16.mxu0 0
  %641 = vmatpush1.bf16.msra.mxu0 0
  %642 = vmatprep.subr.bf16.mxu0 0
  %643 = vmatpush1.bf16.msra.mxu0 0
  %644 = vmatprep.subr.bf16.mxu0 0
  %645 = vmatpush1.bf16.msra.mxu0 0
  %646 = vmatprep.subr.bf16.mxu0 0
  %647 = vmatpush1.bf16.msra.mxu0 0
  %648 = vmatprep.subr.bf16.mxu0 0
  %649 = vmatpush1.bf16.msra.mxu0 0
  %650 = vmatprep.subr.bf16.mxu0 0
  %651 = vmatpush1.bf16.msra.mxu0 0
  %652 = vmatprep.subr.bf16.mxu0 0
  %653 = vmatpush1.bf16.msra.mxu0 0
  %654 = vmatprep.subr.bf16.mxu0 0
  %655 = vmatpush1.bf16.msra.mxu0 %v638
  %656 = vmatprep.subr.bf16.mxu0 0
  %657 = vmatpush2.bf16.msra.mxu0 0
  %658 = vmatprep.subr.bf16.mxu0 0
  %659 = vmatpush2.bf16.msra.mxu0 0
  %660 = vmatprep.subr.bf16.mxu0 0
  %661 = vmatpush2.bf16.msra.mxu0 0
  %662 = vmatprep.subr.bf16.mxu0 0
  %663 = vmatpush2.bf16.msra.mxu0 0
  %664 = vmatprep.subr.bf16.mxu0 0
  %665 = vmatpush2.bf16.msra.mxu0 0
  %666 = vmatprep.subr.bf16.mxu0 0
  %667 = vmatpush2.bf16.msra.mxu0 0
  %668 = vmatprep.subr.bf16.mxu0 0
  %669 = vmatpush2.bf16.msra.mxu0 0
  %670 = vmatprep.subr.bf16.mxu0 0
  %671 = vmatpush2.bf16.msra.mxu0 0
  %672 = vmatprep.mubr.bf16.mxu0 0
  %673 = vmatmul.mubr.bf16.gmra.mxu0 %v635
  %v674 = vpop.f32.mrf.mxu0
  %v675 = vadd.f32 0.0, %v674
  %v676 = vpop.f32.mrf.mxu0
  %v677 = vpop.f32.mrf.mxu0
  %v678 = vpop.f32.mrf.mxu0
  %679 = vdwg.mxu0
  %680 = vrot.lane.b32.xlu0 %v238, 112
  %v681 = vpop.permute.xlu0 %680
  %682 = vrot.lane.b32.xlu0 %v240, 112
  %v683 = vpop.permute.xlu0 %682
  %v685 = vsel %vm244, %v681, 0
  %v688 = vsel %vm244, %v683, 0
  %690 = vmatprep.subr.bf16.mxu0 0
  %691 = vmatpush1.bf16.xpose.msra.mxu0 0
  %692 = vmatprep.subr.bf16.mxu0 0
  %693 = vmatpush1.bf16.xpose.msra.mxu0 0
  %694 = vmatprep.subr.bf16.mxu0 0
  %695 = vmatpush1.bf16.xpose.msra.mxu0 0
  %696 = vmatprep.subr.bf16.mxu0 0
  %697 = vmatpush1.bf16.xpose.msra.mxu0 0
  %698 = vmatprep.subr.bf16.mxu0 0
  %699 = vmatpush1.bf16.xpose.msra.mxu0 0
  %700 = vmatprep.subr.bf16.mxu0 0
  %701 = vmatpush1.bf16.xpose.msra.mxu0 0
  %702 = vmatprep.subr.bf16.mxu0 0
  %703 = vmatpush1.bf16.xpose.msra.mxu0 0
  %704 = vmatprep.subr.bf16.mxu0 0
  %705 = vmatpush1.bf16.xpose.msra.mxu0 %v688
  %706 = vmatprep.subr.bf16.mxu0 0
  %707 = vmatpush2.bf16.xpose.msra.mxu0 0
  %708 = vmatprep.subr.bf16.mxu0 0
  %709 = vmatpush2.bf16.xpose.msra.mxu0 0
  %710 = vmatprep.subr.bf16.mxu0 0
  %711 = vmatpush2.bf16.xpose.msra.mxu0 0
  %712 = vmatprep.subr.bf16.mxu0 0
  %713 = vmatpush2.bf16.xpose.msra.mxu0 0
  %714 = vmatprep.subr.bf16.mxu0 0
  %715 = vmatpush2.bf16.xpose.msra.mxu0 0
  %716 = vmatprep.subr.bf16.mxu0 0
  %717 = vmatpush2.bf16.xpose.msra.mxu0 0
  %718 = vmatprep.subr.bf16.mxu0 0
  %719 = vmatpush2.bf16.xpose.msra.mxu0 0
  %720 = vmatprep.subr.bf16.mxu0 0
  %721 = vmatpush2.bf16.xpose.msra.mxu0 0
  %722 = vmatprep.mubr.bf16.mxu0 0
  %723 = vmatmul.mubr.bf16.gmra.mxu0 %v685
  %v724 = vpop.f32.mrf.mxu0
  %v725 = vadd.f32 0.0, %v724
  %v726 = vpop.f32.mrf.mxu0
  %v727 = vpop.f32.mrf.mxu0
  %v728 = vpop.f32.mrf.mxu0
  %729 = vdwg.mxu0
  %730 = vrot.lane.b32.xlu0 %v239, 112
  %v731 = vpop.permute.xlu0 %730
  %732 = vrot.lane.b32.xlu0 %v241, 112
  %v733 = vpop.permute.xlu0 %732
  %v735 = vsel %vm244, %v731, 0
  %v738 = vsel %vm244, %v733, 0
  %740 = vmatprep.subr.bf16.mxu0 0
  %741 = vmatpush1.bf16.xpose.msra.mxu0 0
  %742 = vmatprep.subr.bf16.mxu0 0
  %743 = vmatpush1.bf16.xpose.msra.mxu0 0
  %744 = vmatprep.subr.bf16.mxu0 0
  %745 = vmatpush1.bf16.xpose.msra.mxu0 0
  %746 = vmatprep.subr.bf16.mxu0 0
  %747 = vmatpush1.bf16.xpose.msra.mxu0 0
  %748 = vmatprep.subr.bf16.mxu0 0
  %749 = vmatpush1.bf16.xpose.msra.mxu0 0
  %750 = vmatprep.subr.bf16.mxu0 0
  %751 = vmatpush1.bf16.xpose.msra.mxu0 0
  %752 = vmatprep.subr.bf16.mxu0 0
  %753 = vmatpush1.bf16.xpose.msra.mxu0 0
  %754 = vmatprep.subr.bf16.mxu0 0
  %755 = vmatpush1.bf16.xpose.msra.mxu0 %v738
  %756 = vmatprep.subr.bf16.mxu0 0
  %757 = vmatpush2.bf16.xpose.msra.mxu0 0
  %758 = vmatprep.subr.bf16.mxu0 0
  %759 = vmatpush2.bf16.xpose.msra.mxu0 0
  %760 = vmatprep.subr.bf16.mxu0 0
  %761 = vmatpush2.bf16.xpose.msra.mxu0 0
  %762 = vmatprep.subr.bf16.mxu0 0
  %763 = vmatpush2.bf16.xpose.msra.mxu0 0
  %764 = vmatprep.subr.bf16.mxu0 0
  %765 = vmatpush2.bf16.xpose.msra.mxu0 0
  %766 = vmatprep.subr.bf16.mxu0 0
  %767 = vmatpush2.bf16.xpose.msra.mxu0 0
  %768 = vmatprep.subr.bf16.mxu0 0
  %769 = vmatpush2.bf16.xpose.msra.mxu0 0
  %770 = vmatprep.subr.bf16.mxu0 0
  %771 = vmatpush2.bf16.xpose.msra.mxu0 0
  %772 = vmatprep.mubr.bf16.mxu0 0
  %773 = vmatmul.mubr.bf16.gmra.mxu0 %v735
  %v774 = vpop.f32.mrf.mxu0
  %v775 = vadd.f32 0.0, %v774
  %v776 = vpop.f32.mrf.mxu0
  %v777 = vpop.f32.mrf.mxu0
  %v778 = vpop.f32.mrf.mxu0
  %779 = vdwg.mxu0
  %v780 = vsel %vm244, %v725, -inf
  %781 = vmax.xlane.f32.xlu0 %v780
  %v782 = vpop.xlane.xlu0 %781
  %v783 = vsel %vm244, %v775, -inf
  %784 = vmax.xlane.f32.xlu0 %v783
  %v785 = vpop.xlane.xlu0 %784
  %v786 = vsub.f32 %v725, %v782
  %v787 = vsub.f32 %v775, %v785
  %v788 = vmul.f32 %v786, 1.442695
  %v789 = vpow.pop %v788
  %v790 = vmul.f32 %v787, 1.442695
  %v791 = vpow.pop %v790
  %v792 = vsel %vm244, %v789, 0.0
  %793 = vadd.xlane.f32.xlu0 %v792
  %v794 = vpop.xlane.xlu0 %793
  %v795 = vsel %vm244, %v791, 0.0
  %796 = vadd.xlane.f32.xlu0 %v795
  %v797 = vpop.xlane.xlu0 %796
  %v798 = vrcp.pop %v794
  %v799 = vrcp.pop %v797
  %v800 = vmul.f32 %v789, %v798
  %v801 = vmul.f32 %v791, %v799
  %v802 = vpack.c.bf16 %v800, %v800
  %v803 = vpack.c.bf16 %v801, %v801
  %804 = vrot.lane.b32.xlu0 %v242, 112
  %v805 = vpop.permute.xlu0 %804
  %v807 = vsel %vm244, %v802, 0
  %v810 = vsel %vm364, %v805, 0
  %812 = vmatprep.subr.bf16.mxu0 0
  %813 = vmatpush1.bf16.msra.mxu0 0
  %814 = vmatprep.subr.bf16.mxu0 0
  %815 = vmatpush1.bf16.msra.mxu0 0
  %816 = vmatprep.subr.bf16.mxu0 0
  %817 = vmatpush1.bf16.msra.mxu0 0
  %818 = vmatprep.subr.bf16.mxu0 0
  %819 = vmatpush1.bf16.msra.mxu0 0
  %820 = vmatprep.subr.bf16.mxu0 0
  %821 = vmatpush1.bf16.msra.mxu0 0
  %822 = vmatprep.subr.bf16.mxu0 0
  %823 = vmatpush1.bf16.msra.mxu0 0
  %824 = vmatprep.subr.bf16.mxu0 0
  %825 = vmatpush1.bf16.msra.mxu0 0
  %826 = vmatprep.subr.bf16.mxu0 0
  %827 = vmatpush1.bf16.msra.mxu0 %v810
  %828 = vmatprep.subr.bf16.mxu0 0
  %829 = vmatpush2.bf16.msra.mxu0 0
  %830 = vmatprep.subr.bf16.mxu0 0
  %831 = vmatpush2.bf16.msra.mxu0 0
  %832 = vmatprep.subr.bf16.mxu0 0
  %833 = vmatpush2.bf16.msra.mxu0 0
  %834 = vmatprep.subr.bf16.mxu0 0
  %835 = vmatpush2.bf16.msra.mxu0 0
  %836 = vmatprep.subr.bf16.mxu0 0
  %837 = vmatpush2.bf16.msra.mxu0 0
  %838 = vmatprep.subr.bf16.mxu0 0
  %839 = vmatpush2.bf16.msra.mxu0 0
  %840 = vmatprep.subr.bf16.mxu0 0
  %841 = vmatpush2.bf16.msra.mxu0 0
  %842 = vmatprep.subr.bf16.mxu0 0
  %843 = vmatpush2.bf16.msra.mxu0 0
  %844 = vmatprep.mubr.bf16.mxu0 0
  %845 = vmatmul.mubr.bf16.gmra.mxu0 %v807
  %v846 = vpop.f32.mrf.mxu0
  %v847 = vadd.f32 0.0, %v846
  %v848 = vpop.f32.mrf.mxu0
  %v849 = vpop.f32.mrf.mxu0
  %v850 = vpop.f32.mrf.mxu0
  %851 = vdwg.mxu0
  %852 = vrot.lane.b32.xlu0 %v243, 112
  %v853 = vpop.permute.xlu0 %852
  %v855 = vsel %vm244, %v803, 0
  %v858 = vsel %vm364, %v853, 0
  %860 = vmatprep.subr.bf16.mxu0 0
  %861 = vmatpush1.bf16.msra.mxu0 0
  %862 = vmatprep.subr.bf16.mxu0 0
  %863 = vmatpush1.bf16.msra.mxu0 0
  %864 = vmatprep.subr.bf16.mxu0 0
  %865 = vmatpush1.bf16.msra.mxu0 0
  %866 = vmatprep.subr.bf16.mxu0 0
  %867 = vmatpush1.bf16.msra.mxu0 0
  %868 = vmatprep.subr.bf16.mxu0 0
  %869 = vmatpush1.bf16.msra.mxu0 0
  %870 = vmatprep.subr.bf16.mxu0 0
  %871 = vmatpush1.bf16.msra.mxu0 0
  %872 = vmatprep.subr.bf16.mxu0 0
  %873 = vmatpush1.bf16.msra.mxu0 0
  %874 = vmatprep.subr.bf16.mxu0 0
  %875 = vmatpush1.bf16.msra.mxu0 %v858
  %876 = vmatprep.subr.bf16.mxu0 0
  %877 = vmatpush2.bf16.msra.mxu0 0
  %878 = vmatprep.subr.bf16.mxu0 0
  %879 = vmatpush2.bf16.msra.mxu0 0
  %880 = vmatprep.subr.bf16.mxu0 0
  %881 = vmatpush2.bf16.msra.mxu0 0
  %882 = vmatprep.subr.bf16.mxu0 0
  %883 = vmatpush2.bf16.msra.mxu0 0
  %884 = vmatprep.subr.bf16.mxu0 0
  %885 = vmatpush2.bf16.msra.mxu0 0
  %886 = vmatprep.subr.bf16.mxu0 0
  %887 = vmatpush2.bf16.msra.mxu0 0
  %888 = vmatprep.subr.bf16.mxu0 0
  %889 = vmatpush2.bf16.msra.mxu0 0
  %890 = vmatprep.subr.bf16.mxu0 0
  %891 = vmatpush2.bf16.msra.mxu0 0
  %892 = vmatprep.mubr.bf16.mxu0 0
  %893 = vmatmul.mubr.bf16.gmra.mxu0 %v855
  %v894 = vpop.f32.mrf.mxu0
  %v895 = vadd.f32 0.0, %v894
  %v896 = vpop.f32.mrf.mxu0
  %v897 = vpop.f32.mrf.mxu0
  %v898 = vpop.f32.mrf.mxu0
  %899 = vdwg.mxu0
  %900 = vrot.lane.b32.xlu0 %v238, 104
  %v901 = vpop.permute.xlu0 %900
  %902 = vrot.lane.b32.xlu0 %v240, 104
  %v903 = vpop.permute.xlu0 %902
  %v905 = vsel %vm244, %v901, 0
  %v908 = vsel %vm244, %v903, 0
  %910 = vmatprep.subr.bf16.mxu0 0
  %911 = vmatpush1.bf16.xpose.msra.mxu0 0
  %912 = vmatprep.subr.bf16.mxu0 0
  %913 = vmatpush1.bf16.xpose.msra.mxu0 0
  %914 = vmatprep.subr.bf16.mxu0 0
  %915 = vmatpush1.bf16.xpose.msra.mxu0 0
  %916 = vmatprep.subr.bf16.mxu0 0
  %917 = vmatpush1.bf16.xpose.msra.mxu0 0
  %918 = vmatprep.subr.bf16.mxu0 0
  %919 = vmatpush1.bf16.xpose.msra.mxu0 0
  %920 = vmatprep.subr.bf16.mxu0 0
  %921 = vmatpush1.bf16.xpose.msra.mxu0 0
  %922 = vmatprep.subr.bf16.mxu0 0
  %923 = vmatpush1.bf16.xpose.msra.mxu0 0
  %924 = vmatprep.subr.bf16.mxu0 0
  %925 = vmatpush1.bf16.xpose.msra.mxu0 %v908
  %926 = vmatprep.subr.bf16.mxu0 0
  %927 = vmatpush2.bf16.xpose.msra.mxu0 0
  %928 = vmatprep.subr.bf16.mxu0 0
  %929 = vmatpush2.bf16.xpose.msra.mxu0 0
  %930 = vmatprep.subr.bf16.mxu0 0
  %931 = vmatpush2.bf16.xpose.msra.mxu0 0
  %932 = vmatprep.subr.bf16.mxu0 0
  %933 = vmatpush2.bf16.xpose.msra.mxu0 0
  %934 = vmatprep.subr.bf16.mxu0 0
  %935 = vmatpush2.bf16.xpose.msra.mxu0 0
  %936 = vmatprep.subr.bf16.mxu0 0
  %937 = vmatpush2.bf16.xpose.msra.mxu0 0
  %938 = vmatprep.subr.bf16.mxu0 0
  %939 = vmatpush2.bf16.xpose.msra.mxu0 0
  %940 = vmatprep.subr.bf16.mxu0 0
  %941 = vmatpush2.bf16.xpose.msra.mxu0 0
  %942 = vmatprep.mubr.bf16.mxu0 0
  %943 = vmatmul.mubr.bf16.gmra.mxu0 %v905
  %v944 = vpop.f32.mrf.mxu0
  %v945 = vadd.f32 0.0, %v944
  %v946 = vpop.f32.mrf.mxu0
  %v947 = vpop.f32.mrf.mxu0
  %v948 = vpop.f32.mrf.mxu0
  %949 = vdwg.mxu0
  %950 = vrot.lane.b32.xlu0 %v239, 104
  %v951 = vpop.permute.xlu0 %950
  %952 = vrot.lane.b32.xlu0 %v241, 104
  %v953 = vpop.permute.xlu0 %952
  %v955 = vsel %vm244, %v951, 0
  %v958 = vsel %vm244, %v953, 0
  %960 = vmatprep.subr.bf16.mxu0 0
  %961 = vmatpush1.bf16.xpose.msra.mxu0 0
  %962 = vmatprep.subr.bf16.mxu0 0
  %963 = vmatpush1.bf16.xpose.msra.mxu0 0
  %964 = vmatprep.subr.bf16.mxu0 0
  %965 = vmatpush1.bf16.xpose.msra.mxu0 0
  %966 = vmatprep.subr.bf16.mxu0 0
  %967 = vmatpush1.bf16.xpose.msra.mxu0 0
  %968 = vmatprep.subr.bf16.mxu0 0
  %969 = vmatpush1.bf16.xpose.msra.mxu0 0
  %970 = vmatprep.subr.bf16.mxu0 0
  %971 = vmatpush1.bf16.xpose.msra.mxu0 0
  %972 = vmatprep.subr.bf16.mxu0 0
  %973 = vmatpush1.bf16.xpose.msra.mxu0 0
  %974 = vmatprep.subr.bf16.mxu0 0
  %975 = vmatpush1.bf16.xpose.msra.mxu0 %v958
  %976 = vmatprep.subr.bf16.mxu0 0
  %977 = vmatpush2.bf16.xpose.msra.mxu0 0
  %978 = vmatprep.subr.bf16.mxu0 0
  %979 = vmatpush2.bf16.xpose.msra.mxu0 0
  %980 = vmatprep.subr.bf16.mxu0 0
  %981 = vmatpush2.bf16.xpose.msra.mxu0 0
  %982 = vmatprep.subr.bf16.mxu0 0
  %983 = vmatpush2.bf16.xpose.msra.mxu0 0
  %984 = vmatprep.subr.bf16.mxu0 0
  %985 = vmatpush2.bf16.xpose.msra.mxu0 0
  %986 = vmatprep.subr.bf16.mxu0 0
  %987 = vmatpush2.bf16.xpose.msra.mxu0 0
  %988 = vmatprep.subr.bf16.mxu0 0
  %989 = vmatpush2.bf16.xpose.msra.mxu0 0
  %990 = vmatprep.subr.bf16.mxu0 0
  %991 = vmatpush2.bf16.xpose.msra.mxu0 0
  %992 = vmatprep.mubr.bf16.mxu0 0
  %993 = vmatmul.mubr.bf16.gmra.mxu0 %v955
  %v994 = vpop.f32.mrf.mxu0
  %v995 = vadd.f32 0.0, %v994
  %v996 = vpop.f32.mrf.mxu0
  %v997 = vpop.f32.mrf.mxu0
  %v998 = vpop.f32.mrf.mxu0
  %999 = vdwg.mxu0
  %v1000 = vsel %vm244, %v945, -inf
  %1001 = vmax.xlane.f32.xlu0 %v1000
  %v1002 = vpop.xlane.xlu0 %1001
  %v1003 = vsel %vm244, %v995, -inf
  %1004 = vmax.xlane.f32.xlu0 %v1003
  %v1005 = vpop.xlane.xlu0 %1004
  %v1006 = vsub.f32 %v945, %v1002
  %v1007 = vsub.f32 %v995, %v1005
  %v1008 = vmul.f32 %v1006, 1.442695
  %v1009 = vpow.pop %v1008
  %v1010 = vmul.f32 %v1007, 1.442695
  %v1011 = vpow.pop %v1010
  %v1012 = vsel %vm244, %v1009, 0.0
  %1013 = vadd.xlane.f32.xlu0 %v1012
  %v1014 = vpop.xlane.xlu0 %1013
  %v1015 = vsel %vm244, %v1011, 0.0
  %1016 = vadd.xlane.f32.xlu0 %v1015
  %v1017 = vpop.xlane.xlu0 %1016
  %v1018 = vrcp.pop %v1014
  %v1019 = vrcp.pop %v1017
  %v1020 = vmul.f32 %v1009, %v1018
  %v1021 = vmul.f32 %v1011, %v1019
  %v1022 = vpack.c.bf16 %v1020, %v1020
  %v1023 = vpack.c.bf16 %v1021, %v1021
  %1024 = vrot.lane.b32.xlu0 %v242, 104
  %v1025 = vpop.permute.xlu0 %1024
  %v1027 = vsel %vm244, %v1022, 0
  %v1030 = vsel %vm364, %v1025, 0
  %1032 = vmatprep.subr.bf16.mxu0 0
  %1033 = vmatpush1.bf16.msra.mxu0 0
  %1034 = vmatprep.subr.bf16.mxu0 0
  %1035 = vmatpush1.bf16.msra.mxu0 0
  %1036 = vmatprep.subr.bf16.mxu0 0
  %1037 = vmatpush1.bf16.msra.mxu0 0
  %1038 = vmatprep.subr.bf16.mxu0 0
  %1039 = vmatpush1.bf16.msra.mxu0 0
  %1040 = vmatprep.subr.bf16.mxu0 0
  %1041 = vmatpush1.bf16.msra.mxu0 0
  %1042 = vmatprep.subr.bf16.mxu0 0
  %1043 = vmatpush1.bf16.msra.mxu0 0
  %1044 = vmatprep.subr.bf16.mxu0 0
  %1045 = vmatpush1.bf16.msra.mxu0 0
  %1046 = vmatprep.subr.bf16.mxu0 0
  %1047 = vmatpush1.bf16.msra.mxu0 %v1030
  %1048 = vmatprep.subr.bf16.mxu0 0
  %1049 = vmatpush2.bf16.msra.mxu0 0
  %1050 = vmatprep.subr.bf16.mxu0 0
  %1051 = vmatpush2.bf16.msra.mxu0 0
  %1052 = vmatprep.subr.bf16.mxu0 0
  %1053 = vmatpush2.bf16.msra.mxu0 0
  %1054 = vmatprep.subr.bf16.mxu0 0
  %1055 = vmatpush2.bf16.msra.mxu0 0
  %1056 = vmatprep.subr.bf16.mxu0 0
  %1057 = vmatpush2.bf16.msra.mxu0 0
  %1058 = vmatprep.subr.bf16.mxu0 0
  %1059 = vmatpush2.bf16.msra.mxu0 0
  %1060 = vmatprep.subr.bf16.mxu0 0
  %1061 = vmatpush2.bf16.msra.mxu0 0
  %1062 = vmatprep.subr.bf16.mxu0 0
  %1063 = vmatpush2.bf16.msra.mxu0 0
  %1064 = vmatprep.mubr.bf16.mxu0 0
  %1065 = vmatmul.mubr.bf16.gmra.mxu0 %v1027
  %v1066 = vpop.f32.mrf.mxu0
  %v1067 = vadd.f32 0.0, %v1066
  %v1068 = vpop.f32.mrf.mxu0
  %v1069 = vpop.f32.mrf.mxu0
  %v1070 = vpop.f32.mrf.mxu0
  %1071 = vdwg.mxu0
  %1072 = vrot.lane.b32.xlu0 %v243, 104
  %v1073 = vpop.permute.xlu0 %1072
  %v1075 = vsel %vm244, %v1023, 0
  %v1078 = vsel %vm364, %v1073, 0
  %1080 = vmatprep.subr.bf16.mxu0 0
  %1081 = vmatpush1.bf16.msra.mxu0 0
  %1082 = vmatprep.subr.bf16.mxu0 0
  %1083 = vmatpush1.bf16.msra.mxu0 0
  %1084 = vmatprep.subr.bf16.mxu0 0
  %1085 = vmatpush1.bf16.msra.mxu0 0
  %1086 = vmatprep.subr.bf16.mxu0 0
  %1087 = vmatpush1.bf16.msra.mxu0 0
  %1088 = vmatprep.subr.bf16.mxu0 0
  %1089 = vmatpush1.bf16.msra.mxu0 0
  %1090 = vmatprep.subr.bf16.mxu0 0
  %1091 = vmatpush1.bf16.msra.mxu0 0
  %1092 = vmatprep.subr.bf16.mxu0 0
  %1093 = vmatpush1.bf16.msra.mxu0 0
  %1094 = vmatprep.subr.bf16.mxu0 0
  %1095 = vmatpush1.bf16.msra.mxu0 %v1078
  %1096 = vmatprep.subr.bf16.mxu0 0
  %1097 = vmatpush2.bf16.msra.mxu0 0
  %1098 = vmatprep.subr.bf16.mxu0 0
  %1099 = vmatpush2.bf16.msra.mxu0 0
  %1100 = vmatprep.subr.bf16.mxu0 0
  %1101 = vmatpush2.bf16.msra.mxu0 0
  %1102 = vmatprep.subr.bf16.mxu0 0
  %1103 = vmatpush2.bf16.msra.mxu0 0
  %1104 = vmatprep.subr.bf16.mxu0 0
  %1105 = vmatpush2.bf16.msra.mxu0 0
  %1106 = vmatprep.subr.bf16.mxu0 0
  %1107 = vmatpush2.bf16.msra.mxu0 0
  %1108 = vmatprep.subr.bf16.mxu0 0
  %1109 = vmatpush2.bf16.msra.mxu0 0
  %1110 = vmatprep.subr.bf16.mxu0 0
  %1111 = vmatpush2.bf16.msra.mxu0 0
  %1112 = vmatprep.mubr.bf16.mxu0 0
  %1113 = vmatmul.mubr.bf16.gmra.mxu0 %v1075
  %v1114 = vpop.f32.mrf.mxu0
  %v1115 = vadd.f32 0.0, %v1114
  %v1116 = vpop.f32.mrf.mxu0
  %v1117 = vpop.f32.mrf.mxu0
  %v1118 = vpop.f32.mrf.mxu0
  %1119 = vdwg.mxu0
  %1122 = vrot.lane.b32.xlu0 %v626, 8
  %v1123 = vpop.permute.xlu0 %1122
  %1124 = vrot.lane.b32.xlu0 %v675, 8
  %v1125 = vpop.permute.xlu0 %1124
  %1130 = vrot.lane.b32.xlu0 %v847, 16
  %v1131 = vpop.permute.xlu0 %1130
  %1132 = vrot.lane.b32.xlu0 %v895, 16
  %v1133 = vpop.permute.xlu0 %1132
  %1138 = vrot.lane.b32.xlu0 %v1067, 24
  %v1139 = vpop.permute.xlu0 %1138
  %1140 = vrot.lane.b32.xlu0 %v1115, 24
  %v1141 = vpop.permute.xlu0 %1140
  %v1144 = vsel %vm244, %v403, %v1123
  %v1145 = vsel %vm244, %v449, %v1125
  %v1146 = vsel %vm137, %v1144, %v1131
  %v1147 = vsel %vm137, %v1145, %v1133
  %vm1148 = vcmask 195584
  %v1149 = vsel %vm1148, %v1146, %v1139
  %v1150 = vsel %vm1148, %v1147, %v1141
  %v1151 = vpack.c.bf16 %v1150, %v1149
  %v1152 = vld [vmem:[%s8] sm:$0xf]
  %v1153 = vld [vmem:[%s8 + $0x4] sm:$0xf]
  %v1154 = vld [vmem:[%s8 + $0x8] sm:$0xf]
  %v1155 = vld [vmem:[%s8 + $0xc] sm:$0xf]
  %v1156 = vld [vmem:[%s9] sm:$0x1]
  %v1158 = vlaneseq
  %v1159 = vshrl.u32 %v1158, 7
  %v1160 = vsub.s32 0, %v1159
  %v1161 = vrot.slane %v1156, %v1160
  %v1167 = vunpack.c.l.b16 %v1152
  %v1168 = vunpack.c.l.b16 %v1153
  %v1169 = vunpack.c.l.b16 %v1154
  %v1170 = vunpack.c.l.b16 %v1155
  %v1171 = vpack.c.b16 %v1168, %v1167
  %v1172 = vpack.c.b16 %v1170, %v1169
  %v1176 = vsel %vm76, %v1151, 0
  %1178 = vmatprep.subr.bf16.mxu0 0
  %1179 = vmatpush1.bf16.msra.mxu0 0
  %1180 = vmatprep.subr.bf16.mxu0 0
  %1181 = vmatpush1.bf16.msra.mxu0 0
  %1182 = vmatprep.subr.bf16.mxu0 0
  %1183 = vmatpush1.bf16.msra.mxu0 0
  %1184 = vmatprep.subr.bf16.mxu0 0
  %1185 = vmatpush1.bf16.msra.mxu0 0
  %1186 = vmatprep.subr.bf16.mxu0 0
  %1187 = vmatpush1.bf16.msra.mxu0 0
  %1188 = vmatprep.subr.bf16.mxu0 0
  %1189 = vmatpush1.bf16.msra.mxu0 0
  %1190 = vmatprep.subr.bf16.mxu0 0
  %1191 = vmatpush1.bf16.msra.mxu0 %v1172
  %1192 = vmatprep.subr.bf16.mxu0 0
  %1193 = vmatpush1.bf16.msra.mxu0 %v1171
  %1194 = vmatprep.subr.bf16.mxu0 0
  %1195 = vmatpush2.bf16.msra.mxu0 0
  %1196 = vmatprep.subr.bf16.mxu0 0
  %1197 = vmatpush2.bf16.msra.mxu0 0
  %1198 = vmatprep.subr.bf16.mxu0 0
  %1199 = vmatpush2.bf16.msra.mxu0 0
  %1200 = vmatprep.subr.bf16.mxu0 0
  %1201 = vmatpush2.bf16.msra.mxu0 0
  %1202 = vmatprep.subr.bf16.mxu0 0
  %1203 = vmatpush2.bf16.msra.mxu0 0
  %1204 = vmatprep.subr.bf16.mxu0 0
  %1205 = vmatpush2.bf16.msra.mxu0 0
  %1206 = vmatprep.subr.bf16.mxu0 0
  %1207 = vmatpush2.bf16.msra.mxu0 0
  %1208 = vmatprep.subr.bf16.mxu0 0
  %1209 = vmatpush2.bf16.msra.mxu0 0
  %1210 = vmatprep.mubr.bf16.mxu0 0
  %1211 = vmatmul.mubr.bf16.gmra.mxu0 %v1176
  %v1212 = vpop.f32.mrf.mxu0
  %v1213 = vadd.f32 %v1161, %v1212
  %v1214 = vpop.f32.mrf.mxu0
  %v1215 = vpop.f32.mrf.mxu0
  %v1216 = vadd.f32 %v1161, %v1215
  %v1217 = vpop.f32.mrf.mxu0
  %1218 = vdwg.mxu0
  %v1219 = vadd.f32 %v48, %v1213
  %v1220 = vadd.f32 %v49, %v1216
  %v1221 = vsel %vm76, %v1219, 0.0
  %1222 = vadd.xlane.f32.xlu0 %v1221
  %v1223 = vpop.xlane.xlu0 %1222
  %v1224 = vsel %vm76, %v1220, 0.0
  %1225 = vadd.xlane.f32.xlu0 %v1224
  %v1226 = vpop.xlane.xlu0 %1225
  %v1227 = vrcp.pop 32.0
  %v1228 = vmul.f32 %v1223, %v1227
  %v1229 = vmul.f32 %v1226, %v1227
  %v1230 = vsub.f32 %v1219, %v1228
  %v1231 = vsub.f32 %v1220, %v1229
  %v1232 = vmul.f32 %v1230, %v1230
  %v1233 = vmul.f32 %v1231, %v1231
  %v1234 = vsel %vm76, %v1232, 0.0
  %1235 = vadd.xlane.f32.xlu0 %v1234
  %v1236 = vpop.xlane.xlu0 %1235
  %v1237 = vsel %vm76, %v1233, 0.0
  %1238 = vadd.xlane.f32.xlu0 %v1237
  %v1239 = vpop.xlane.xlu0 %1238
  %v1240 = vmul.f32 %v1236, %v1227
  %v1241 = vmul.f32 %v1239, %v1227
  %v1242 = vadd.f32 %v1240, 1e-05
  %v1243 = vadd.f32 %v1241, 1e-05
  %v1244 = vrsqrt.pop %v1242
  %v1245 = vrsqrt.pop %v1243
  %v1246 = vmul.f32 %v1230, %v1244
  %v1247 = vmul.f32 %v1231, %v1245
  %v1248 = vld [vmem:[%s10] sm:$0x1]
  %v1250 = vlaneseq
  %v1251 = vshrl.u32 %v1250, 7
  %v1252 = vsub.s32 0, %v1251
  %v1253 = vrot.slane %v1248, %v1252
  %v1255 = vmul.f32 %v1246, %v1253
  %v1256 = vmul.f32 %v1247, %v1253
  %v1257 = vld [vmem:[%s11] sm:$0x1]
  %v1259 = vlaneseq
  %v1260 = vshrl.u32 %v1259, 7
  %v1261 = vsub.s32 0, %v1260
  %v1262 = vrot.slane %v1257, %v1261
  %v1264 = vadd.f32 %v1255, %v1262
  %v1265 = vadd.f32 %v1256, %v1262
  %v1266 = vadd.f32 %v1264, %v1264
  %v1267 = vadd.f32 %v1265, %v1265
  %v1268 = vsel %vm76, %v1266, 0.0
  %1269 = vadd.xlane.f32.xlu0 %v1268
  %v1270 = vpop.xlane.xlu0 %1269
  %v1271 = vsel %vm76, %v1267, 0.0
  %1272 = vadd.xlane.f32.xlu0 %v1271
  %v1273 = vpop.xlane.xlu0 %1272
  %v1274 = vmul.f32 %v1270, %v1227
  %v1275 = vmul.f32 %v1273, %v1227
  %v1276 = vsub.f32 %v1266, %v1274
  %v1277 = vsub.f32 %v1267, %v1275
  %v1278 = vmul.f32 %v1276, %v1276
  %v1279 = vmul.f32 %v1277, %v1277
  %v1280 = vsel %vm76, %v1278, 0.0
  %1281 = vadd.xlane.f32.xlu0 %v1280
  %v1282 = vpop.xlane.xlu0 %1281
  %v1283 = vsel %vm76, %v1279, 0.0
  %1284 = vadd.xlane.f32.xlu0 %v1283
  %v1285 = vpop.xlane.xlu0 %1284
  %v1286 = vmul.f32 %v1282, %v1227
  %v1287 = vmul.f32 %v1285, %v1227
  %v1288 = vadd.f32 %v1286, 1e-05
  %v1289 = vadd.f32 %v1287, 1e-05
  %v1290 = vrsqrt.pop %v1288
  %v1291 = vrsqrt.pop %v1289
  %v1292 = vmul.f32 %v1276, %v1290
  %v1293 = vmul.f32 %v1277, %v1291
  %v1294 = vld [vmem:[%s12] sm:$0x1]
  %v1296 = vlaneseq
  %v1297 = vshrl.u32 %v1296, 7
  %v1298 = vsub.s32 0, %v1297
  %v1299 = vrot.slane %v1294, %v1298
  %v1301 = vmul.f32 %v1292, %v1299
  %v1302 = vmul.f32 %v1293, %v1299
  %v1303 = vld [vmem:[%s13] sm:$0x1]
  %v1305 = vlaneseq
  %v1306 = vshrl.u32 %v1305, 7
  %v1307 = vsub.s32 0, %v1306
  %v1308 = vrot.slane %v1303, %v1307
  %v1310 = vadd.f32 %v1301, %v1308
  %v1311 = vadd.f32 %v1302, %v1308
  %1312 = vst.msk [vmem:[%s14] sm:$0xff] %vm76, %v1310
  %1313 = vst.msk [vmem:[%s14 + $0x8] sm:$0xff] %vm76, %v1311
  // Predicated region
  $region58: #{attention_forward.1} parent=0 // pred_check
    _
  $region59: #{attention_forward.1} parent=0 // pred_check_branch
    %1315 = sbr.rel (0) target = $region61
  $region60: #{attention_forward.1} parent=0 // pred_region
    _
  $region61: #{attention_forward.1} parent=0 // pred_fallthru
    _
  // Predicated region
  $region62: #{attention_forward.1} parent=0 // pred_check
    _
  $region63: #{attention_forward.1} parent=0 // pred_check_branch
    %1317 = sbr.rel (0) target = $region65
  $region64: #{attention_forward.1} parent=0 // pred_region
    _
  $region65: #{attention_forward.1} parent=0 // pred_fallthru
    _

</llo_original>
